<compile_context>
chip_gen: v6e
topology: v6e:2x2x1
jax: 0.10.0
libtpu: 0.0.40
codegen_flags: <defaults>
</compile_context>

<pallas_src>
import numpy as np

import jax
import jax.numpy as jnp
from jax import lax
from jax.experimental import pallas as pl
from jax.experimental.pallas import tpu as pltpu

NEG_SLOPE = 0.01      # PyTorch F.leaky_relu default
_TB = 8               # boards processed per grid step (one sublane tile)


def _leaky_relu(x):
    return jnp.where(x > 0, x, NEG_SLOPE * x)


# ---------------------------------------------------------------------------
# Static index tables (plain numpy, computed once at import time).
# ---------------------------------------------------------------------------

def _conv1_matrix_tables():
    # W1[b, q*16+ic] = wc1[ic, 0, ki, kj]  where board cell b = (qi+ki)*6+(qj+kj)
    # for conv1 output position q = qi*5+qj (5x5 output, 2x2 kernel).
    idx = np.zeros((36, 400), np.int32)
    msk = np.zeros((36, 400), np.float32)
    for qi in range(5):
        for qj in range(5):
            for ic in range(16):
                col = (qi * 5 + qj) * 16 + ic
                for ki in range(2):
                    for kj in range(2):
                        row = (qi + ki) * 6 + (qj + kj)
                        idx[row, col] = ic * 4 + ki * 2 + kj
                        msk[row, col] = 1.0
    return idx, msk


def _conv2_matrix_tables():
    # W2[q*16+ic, c*9+p] = wc2[c, ic, di, dj] where q = (oi+di)*5+(oj+dj),
    # p = oi*3+oj.  Column order c*9+p == PyTorch's y.view(-1, 288) layout,
    # so the conv2 matmul output feeds fc1 directly (no permutation needed).
    idx = np.zeros((400, 288), np.int32)
    msk = np.zeros((400, 288), np.float32)
    for oi in range(3):
        for oj in range(3):
            p = oi * 3 + oj
            for c in range(32):
                col = c * 9 + p
                for ic in range(16):
                    for di in range(3):
                        for dj in range(3):
                            row = ((oi + di) * 5 + (oj + dj)) * 16 + ic
                            idx[row, col] = ((c * 16 + ic) * 3 + di) * 3 + dj
                            msk[row, col] = 1.0
    return idx, msk


_C1_IDX, _C1_MSK = _conv1_matrix_tables()
_C2_IDX, _C2_MSK = _conv2_matrix_tables()


# ---------------------------------------------------------------------------
# One-time parameter preparation (hoisted out of the per-call hot path).
# ---------------------------------------------------------------------------

def prepare_params(params):
    """Precompute kernel-layout weights (bf16). Call once and cache the result."""
    wc1, wc2, wa1, ba1, wa2, ba2, wv1, bv1, wv2, bv2 = params
    f32, bf16 = jnp.float32, jnp.bfloat16

    # conv1 as a dense matmul on the raw board; rows padded 36 -> 128 (zeros)
    # so the kernel's K dim is lane-tile aligned and the board input needs no
    # in-kernel slicing.
    w1_small = jnp.reshape(wc1, (-1,))[_C1_IDX] * _C1_MSK          # (36, 400)
    w1 = jnp.zeros((128, 400), f32).at[:36, :].set(w1_small)       # (128, 400)

    # conv2 as a dense matmul producing PyTorch's channel-major flatten.
    w2 = jnp.reshape(wc2, (-1,))[_C2_IDX] * _C2_MSK                # (400, 288)

    # Fused fc_action1 | fc_value1: (288, 120); cols 0..71 action, 72..119 value.
    wf = jnp.concatenate([wa1.T, wv1.T], axis=1)                   # (288, 120)

    # Fused fc_action2 | fc_value2, padded to 128 output lanes:
    # cols 0..35 action logits, col 36 value, rest zero (kills cross terms).
    wh = jnp.zeros((120, 128), f32)
    wh = wh.at[:72, 0:36].set(wa2.T)
    wh = wh.at[72:120, 36:37].set(wv2.T)

    # Biases packed into one lane-aligned f32 row:
    #   lanes 0..119  : fc1 bias (72 action + 48 value)
    #   lanes 128..163: fc_action2 bias, lane 164: fc_value2 bias
    b = jnp.zeros((1, 256), f32)
    b = b.at[0, 0:72].set(ba1)
    b = b.at[0, 72:120].set(bv1)
    b = b.at[0, 128:164].set(ba2)
    b = b.at[0, 164:165].set(bv2)

    return (w1.astype(bf16), w2.astype(bf16), wf.astype(bf16),
            wh.astype(bf16), b.astype(f32))


# ---------------------------------------------------------------------------
# Kernel: processes _TB boards per grid step.
# ---------------------------------------------------------------------------

def policy_kernel(x_ref, w1_ref, w2_ref, wf_ref, wh_ref, b_ref, out_ref):
    f32 = jnp.float32

    x = x_ref[...]                                  # (_TB, 128) f32, board in lanes 0..35
    # bf16 weights (small DMA) up-cast to f32; matmuls accumulate in f32.
    w1 = w1_ref[...].astype(f32)                    # (128, 400)
    w2 = w2_ref[...].astype(f32)                    # (400, 288)
    wf = wf_ref[...].astype(f32)                    # (288, 120)
    wh = wh_ref[...].astype(f32)                    # (120, 128)
    b1 = b_ref[:, 0:120]                            # (1, 120) fc1 bias
    b2 = b_ref[:, 128:256]                          # (1, 128) head bias (lanes 0..36)

    # conv1 + leaky_relu   (board -> 5x5 x 16ch activations)
    c1 = _leaky_relu(jnp.dot(x, w1, preferred_element_type=f32))         # (_TB, 400)
    # conv2 + leaky_relu   (-> PyTorch channel-major flatten, 288)
    y2 = _leaky_relu(jnp.dot(c1, w2, preferred_element_type=f32))        # (_TB, 288)
    # fused fc_action1 | fc_value1 + leaky_relu
    h = _leaky_relu(jnp.dot(y2, wf, preferred_element_type=f32) + b1)    # (_TB, 120)
    # fused fc_action2 | fc_value2 (lane 0..35 logits, lane 36 value_pre)
    hd = jnp.dot(h, wh, preferred_element_type=f32) + b2                 # (_TB, 128)

    lane = lax.broadcasted_iota(jnp.int32, hd.shape, 1)
    is_logit = lane < 36
    is_value = lane == 36

    # availability-masked per-board softmax (matches the PyTorch forward)
    avail = jnp.where(is_logit, (jnp.abs(x) != 1.0).astype(f32), 0.0)
    masked = jnp.where(is_logit, hd, jnp.float32(-1e30))
    maxa = jnp.max(masked, axis=-1, keepdims=True)
    e = avail * jnp.exp(masked - maxa)
    denom = jnp.sum(e, axis=-1, keepdims=True)
    prob = e * pl.reciprocal(denom, approx=True)    # EUP reciprocal, off the VPU chain

    value = jnp.where(is_value, jnp.tanh(hd), 0.0)

    # single full-width store: prob in lanes 0..35, value in lane 36, zeros elsewhere
    out_ref[...] = prob + value


# ---------------------------------------------------------------------------
# Wrappers.
# ---------------------------------------------------------------------------

def _pack_boards(x):
    """(B,1,6,6) / (1,6,6) / (6,6) board(s) -> (padded_B, 128) f32, board in lanes 0..35."""
    xb = jnp.reshape(x, (-1, 36)).astype(jnp.float32)
    bsz = xb.shape[0]
    pb = ((bsz + _TB - 1) // _TB) * _TB
    xp = jnp.zeros((pb, 128), jnp.float32)
    xp = xp.at[:bsz, 0:36].set(xb)
    return xp


def _policy_call(xp, prep):
    w1, w2, wf, wh, b = prep
    pb = xp.shape[0]
    return pl.pallas_call(
        policy_kernel,
        out_shape=jax.ShapeDtypeStruct((pb, 128), jnp.float32),
        grid=(pb // _TB,),
        in_specs=[
            pl.BlockSpec((_TB, 128), lambda i: (i, 0)),   # boards: one block per step
            pl.BlockSpec((128, 400), lambda i: (0, 0)),   # weights: constant index ->
            pl.BlockSpec((400, 288), lambda i: (0, 0)),   #   DMA'd once per call,
            pl.BlockSpec((288, 120), lambda i: (0, 0)),   #   VMEM-resident across steps
            pl.BlockSpec((120, 128), lambda i: (0, 0)),
            pl.BlockSpec((1, 256), lambda i: (0, 0)),
        ],
        out_specs=pl.BlockSpec((_TB, 128), lambda i: (i, 0)),
        compiler_params=pltpu.CompilerParams(
            dimension_semantics=("parallel",)),           # v7x: use both TensorCores
    )(xp, w1, w2, wf, wh, b)


@jax.jit
def policy_forward(x_nchw, prep):
    """Single board (1,1,6,6). Returns (prob (6,6), value (1,1)) like Policy.forward."""
    out = _policy_call(_pack_boards(x_nchw), prep)
    prob = out[0, 0:36].reshape(6, 6)
    value = out[0, 36:37].reshape(1, 1)
    return prob, value


@jax.jit
def policy_forward_batched(x_batch, prep):
    """Independent boards (B,1,6,6). Returns (prob (B,6,6), value (B,1))."""
    bsz = x_batch.shape[0]
    out = _policy_call(_pack_boards(x_batch), prep)
    prob = out[:bsz, 0:36].reshape(bsz, 6, 6)
    value = out[:bsz, 36:37]
    return prob, value


# ---------------------------------------------------------------------------
# Pure-JAX reference mirroring the PyTorch forward pass exactly (f32 weights).
# ---------------------------------------------------------------------------

def reference_forward(x_nchw, params):
    wc1, wc2, wa1, ba1, wa2, ba2, wv1, bv1, wv2, bv2 = params
    y = lax.conv_general_dilated(x_nchw, wc1, (1, 1), 'VALID',
                                 dimension_numbers=('NCHW', 'OIHW', 'NCHW'))
    y = _leaky_relu(y)
    y = lax.conv_general_dilated(y, wc2, (1, 1), 'VALID',
                                 dimension_numbers=('NCHW', 'OIHW', 'NCHW'))
    y = _leaky_relu(y)
    feat = y.reshape(-1, 288)
    ha = _leaky_relu(feat @ wa1.T + ba1)
    a = ha @ wa2.T + ba2
    avail = (jnp.abs(x_nchw.squeeze()) != 1).astype(jnp.float32).reshape(-1, 36)
    e = avail * jnp.exp(a - jnp.max(a))
    prob = e / jnp.sum(e)
    hv = _leaky_relu(feat @ wv1.T + bv1)
    value = jnp.tanh(hv @ wv2.T + bv2)
    return prob.reshape(6, 6), value


if __name__ == "__main__":
    key = jax.random.PRNGKey(0)
    ks = jax.random.split(key, 12)

    def init(k, shape, scale):
        return scale * jax.random.normal(k, shape, jnp.float32)

    # Deterministic synthetic parameters (shapes from Policy.__init__).
    wc1 = init(ks[0], (16, 1, 2, 2), 0.30)   # conv1, no bias
    wc2 = init(ks[1], (32, 16, 3, 3), 0.10)  # conv2, no bias
    wa1 = init(ks[2], (72, 288), 0.05)       # fc_action1
    ba1 = init(ks[3], (72,), 0.05)
    wa2 = init(ks[4], (36, 72), 0.05)        # fc_action2
    ba2 = init(ks[5], (36,), 0.05)
    wv1 = init(ks[6], (48, 288), 0.05)       # fc_value1
    bv1 = init(ks[7], (48,), 0.05)
    wv2 = init(ks[8], (1, 48), 0.05)         # fc_value2
    bv2 = init(ks[9], (1,), 0.05)
    params = (wc1, wc2, wa1, ba1, wa2, ba2, wv1, bv1, wv2, bv2)

    # One-time kernel-layout parameter prep (cached outside the hot path).
    prep = prepare_params(params)
    prep = jax.tree.map(jax.block_until_ready, prep)

    # Tolerance: the only deviation from the f32 reference is bf16 rounding of
    # the weights (activations/biases/accumulation stay f32).
    ATOL = RTOL = 5e-3

    # --- single-board path (matches the module's batch-1 semantics) ---------
    board = jax.random.randint(ks[10], (6, 6), -1, 2).astype(jnp.float32)
    x = board.reshape(1, 1, 6, 6)
    prob, value = policy_forward(x, prep)
    jax.block_until_ready((prob, value))

    prob_ref, value_ref = reference_forward(x, params)
    assert prob.shape == (6, 6) and value.shape == (1, 1)
    np.testing.assert_allclose(np.asarray(prob), np.asarray(prob_ref),
                               atol=ATOL, rtol=RTOL)
    np.testing.assert_allclose(np.asarray(value), np.asarray(value_ref),
                               atol=ATOL, rtol=RTOL)

    # --- batched path: grid over independent boards, weights DMA'd once -----
    B = 5
    boards = jax.random.randint(ks[11], (B, 6, 6), -1, 2).astype(jnp.float32)
    xb = boards.reshape(B, 1, 6, 6)
    probs, values = policy_forward_batched(xb, prep)
    jax.block_until_ready((probs, values))
    assert probs.shape == (B, 6, 6) and values.shape == (B, 1)
    for i in range(B):
        pr, vr = reference_forward(xb[i:i + 1], params)
        np.testing.assert_allclose(np.asarray(probs[i]), np.asarray(pr),
                                   atol=ATOL, rtol=RTOL)
        np.testing.assert_allclose(np.asarray(values[i]).reshape(1, 1),
                                   np.asarray(vr), atol=ATOL, rtol=RTOL)

    print("KERNEL_OK")
</pallas_src>

<mosaic_0001>
module attributes {stable_mosaic.version = 11 : i64} {
  func.func @policy_kernel(%arg0: i32, %arg1: memref<8x128xf32, #tpu.memory_space<vmem>>, %arg2: memref<128x400xbf16, #tpu.memory_space<vmem>>, %arg3: memref<400x288xbf16, #tpu.memory_space<vmem>>, %arg4: memref<288x120xbf16, #tpu.memory_space<vmem>>, %arg5: memref<120x128xbf16, #tpu.memory_space<vmem>>, %arg6: memref<1x256xf32, #tpu.memory_space<vmem>>, %arg7: memref<8x128xf32, #tpu.memory_space<vmem>>) attributes {dimension_semantics = [#tpu.dimension_semantics<parallel>], iteration_bounds = array<i64: 1>, scalar_prefetch = 0 : i64, scratch_operands = 0 : i64, tpu.core_type = #tpu.core_type<tc>, window_params = [{transform_indices = @transform_0, window_bounds = array<i64: 8, 128>}, {pipeline_mode = #tpu.pipeline_mode<synchronous>, transform_indices = @transform_1, window_bounds = array<i64: 128, 400>}, {pipeline_mode = #tpu.pipeline_mode<synchronous>, transform_indices = @transform_2, window_bounds = array<i64: 400, 288>}, {pipeline_mode = #tpu.pipeline_mode<synchronous>, transform_indices = @transform_3, window_bounds = array<i64: 288, 120>}, {pipeline_mode = #tpu.pipeline_mode<synchronous>, transform_indices = @transform_4, window_bounds = array<i64: 120, 128>}, {pipeline_mode = #tpu.pipeline_mode<synchronous>, transform_indices = @transform_5, window_bounds = array<i64: 1, 256>}, {transform_indices = @transform_6, window_bounds = array<i64: 8, 128>}]} {
    %c0 = arith.constant 0 : index
    %c0_0 = arith.constant 0 : index
    %0 = vector.load %arg1[%c0, %c0_0] : memref<8x128xf32, #tpu.memory_space<vmem>>, vector<8x128xf32>
    %c0_1 = arith.constant 0 : index
    %c0_2 = arith.constant 0 : index
    %1 = vector.load %arg2[%c0_1, %c0_2] : memref<128x400xbf16, #tpu.memory_space<vmem>>, vector<128x400xbf16>
    %2 = arith.extf %1 : vector<128x400xbf16> to vector<128x400xf32>
    %c0_3 = arith.constant 0 : index
    %c0_4 = arith.constant 0 : index
    %3 = vector.load %arg3[%c0_3, %c0_4] : memref<400x288xbf16, #tpu.memory_space<vmem>>, vector<400x288xbf16>
    %4 = arith.extf %3 : vector<400x288xbf16> to vector<400x288xf32>
    %c0_5 = arith.constant 0 : index
    %c0_6 = arith.constant 0 : index
    %5 = vector.load %arg4[%c0_5, %c0_6] : memref<288x120xbf16, #tpu.memory_space<vmem>>, vector<288x120xbf16>
    %6 = arith.extf %5 : vector<288x120xbf16> to vector<288x120xf32>
    %c0_7 = arith.constant 0 : index
    %c0_8 = arith.constant 0 : index
    %7 = vector.load %arg5[%c0_7, %c0_8] : memref<120x128xbf16, #tpu.memory_space<vmem>>, vector<120x128xbf16>
    %8 = arith.extf %7 : vector<120x128xbf16> to vector<120x128xf32>
    %c0_9 = arith.constant 0 : index
    %c0_10 = arith.constant 0 : index
    %9 = vector.load %arg6[%c0_9, %c0_10] : memref<1x256xf32, #tpu.memory_space<vmem>>, vector<1x120xf32>
    %c0_11 = arith.constant 0 : index
    %c128 = arith.constant 128 : index
    %10 = vector.load %arg6[%c0_11, %c128] : memref<1x256xf32, #tpu.memory_space<vmem>>, vector<1x128xf32>
    %cst = arith.constant dense<0.000000e+00> : vector<8x400xf32>
    %11 = tpu.matmul %0, %2, %cst {dimension_numbers = #tpu.dot_dimension_numbers<[1], [0], [0], [1], [0, 0, 1, 1], [], []>} : vector<8x128xf32>, vector<128x400xf32>, vector<8x400xf32> -> vector<8x400xf32>
    %cst_12 = arith.constant 0.000000e+00 : f32
    %12 = vector.broadcast %cst_12 : f32 to vector<8x400xf32>
    %13 = arith.cmpf ogt, %11, %12 : vector<8x400xf32>
    %cst_13 = arith.constant 0.00999999977 : f32
    %14 = vector.broadcast %cst_13 : f32 to vector<8x400xf32>
    %15 = arith.mulf %14, %11 : vector<8x400xf32>
    %16 = arith.select %13, %11, %15 : vector<8x400xi1>, vector<8x400xf32>
    %cst_14 = arith.constant dense<0.000000e+00> : vector<8x288xf32>
    %17 = tpu.matmul %16, %4, %cst_14 {dimension_numbers = #tpu.dot_dimension_numbers<[1], [0], [0], [1], [0, 0, 1, 1], [], []>} : vector<8x400xf32>, vector<400x288xf32>, vector<8x288xf32> -> vector<8x288xf32>
    %cst_15 = arith.constant 0.000000e+00 : f32
    %18 = vector.broadcast %cst_15 : f32 to vector<8x288xf32>
    %19 = arith.cmpf ogt, %17, %18 : vector<8x288xf32>
    %cst_16 = arith.constant 0.00999999977 : f32
    %20 = vector.broadcast %cst_16 : f32 to vector<8x288xf32>
    %21 = arith.mulf %20, %17 : vector<8x288xf32>
    %22 = arith.select %19, %17, %21 : vector<8x288xi1>, vector<8x288xf32>
    %cst_17 = arith.constant dense<0.000000e+00> : vector<8x120xf32>
    %23 = tpu.matmul %22, %6, %cst_17 {dimension_numbers = #tpu.dot_dimension_numbers<[1], [0], [0], [1], [0, 0, 1, 1], [], []>} : vector<8x288xf32>, vector<288x120xf32>, vector<8x120xf32> -> vector<8x120xf32>
    %24 = vector.broadcast %9 : vector<1x120xf32> to vector<8x120xf32>
    %25 = arith.addf %23, %24 : vector<8x120xf32>
    %cst_18 = arith.constant 0.000000e+00 : f32
    %26 = vector.broadcast %cst_18 : f32 to vector<8x120xf32>
    %27 = arith.cmpf ogt, %25, %26 : vector<8x120xf32>
    %cst_19 = arith.constant 0.00999999977 : f32
    %28 = vector.broadcast %cst_19 : f32 to vector<8x120xf32>
    %29 = arith.mulf %28, %25 : vector<8x120xf32>
    %30 = arith.select %27, %25, %29 : vector<8x120xi1>, vector<8x120xf32>
    %cst_20 = arith.constant dense<0.000000e+00> : vector<8x128xf32>
    %31 = tpu.matmul %30, %8, %cst_20 {dimension_numbers = #tpu.dot_dimension_numbers<[1], [0], [0], [1], [0, 0, 1, 1], [], []>} : vector<8x120xf32>, vector<120x128xf32>, vector<8x128xf32> -> vector<8x128xf32>
    %32 = vector.broadcast %10 : vector<1x128xf32> to vector<8x128xf32>
    %33 = arith.addf %31, %32 : vector<8x128xf32>
    %34 = tpu.iota {dimensions = array<i32: 1>} : vector<8x128xi32>
    %c36_i32 = arith.constant 36 : i32
    %35 = vector.broadcast %c36_i32 : i32 to vector<8x128xi32>
    %36 = arith.cmpi slt, %34, %35 : vector<8x128xi32>
    %c36_i32_21 = arith.constant 36 : i32
    %37 = vector.broadcast %c36_i32_21 : i32 to vector<8x128xi32>
    %38 = arith.cmpi eq, %34, %37 : vector<8x128xi32>
    %39 = math.absf %0 : vector<8x128xf32>
    %cst_22 = arith.constant 1.000000e+00 : f32
    %40 = vector.broadcast %cst_22 : f32 to vector<8x128xf32>
    %41 = arith.cmpf one, %39, %40 : vector<8x128xf32>
    %42 = arith.extui %41 : vector<8x128xi1> to vector<8x128xi32>
    %43 = arith.sitofp %42 : vector<8x128xi32> to vector<8x128xf32>
    %cst_23 = arith.constant 0.000000e+00 : f32
    %44 = vector.broadcast %cst_23 : f32 to vector<8x128xf32>
    %45 = arith.select %36, %43, %44 : vector<8x128xi1>, vector<8x128xf32>
    %cst_24 = arith.constant -1.000000e+30 : f32
    %46 = vector.broadcast %cst_24 : f32 to vector<8x128xf32>
    %47 = arith.select %36, %33, %46 : vector<8x128xi1>, vector<8x128xf32>
    %cst_25 = arith.constant dense<0xFF800000> : vector<8xf32>
    %48 = vector.multi_reduction <maximumf>, %47, %cst_25 [1] : vector<8x128xf32> to vector<8xf32>
    %49 = vector.shape_cast %48 : vector<8xf32> to vector<8x1xf32>
    %50 = vector.broadcast %49 : vector<8x1xf32> to vector<8x128xf32>
    %51 = arith.subf %47, %50 : vector<8x128xf32>
    %52 = math.exp %51 : vector<8x128xf32>
    %53 = arith.mulf %45, %52 : vector<8x128xf32>
    %cst_26 = arith.constant dense<0.000000e+00> : vector<8xf32>
    %54 = vector.multi_reduction <add>, %53, %cst_26 [1] : vector<8x128xf32> to vector<8xf32>
    %55 = vector.shape_cast %54 : vector<8xf32> to vector<8x1xf32>
    %56 = tpu.reciprocal %55 {approx = true} : vector<8x1xf32> -> vector<8x1xf32>
    %57 = vector.broadcast %56 : vector<8x1xf32> to vector<8x128xf32>
    %58 = arith.mulf %53, %57 : vector<8x128xf32>
    %59 = math.tanh %33 : vector<8x128xf32>
    %cst_27 = arith.constant 0.000000e+00 : f32
    %60 = vector.broadcast %cst_27 : f32 to vector<8x128xf32>
    %61 = arith.select %38, %59, %60 : vector<8x128xi1>, vector<8x128xf32>
    %62 = arith.addf %58, %61 : vector<8x128xf32>
    %c0_28 = arith.constant 0 : index
    %c0_29 = arith.constant 0 : index
    %63 = vector.load %arg7[%c0_28, %c0_29] : memref<8x128xf32, #tpu.memory_space<vmem>>, vector<8x128xf32>
    tpu.vector_store %arg7[%c0_28, %c0_29], %62 {strides = array<i32>} : memref<8x128xf32, #tpu.memory_space<vmem>>, vector<8x128xf32>,
    return
  }
  func.func @transform_0(%arg0: i32) -> (i32, i32) {
    %c0_i32 = arith.constant 0 : i32
    %c0_i32_0 = arith.constant 0 : i32
    return %arg0, %c0_i32 : i32, i32
  }
  func.func @transform_1(%arg0: i32) -> (i32, i32) {
    %c0_i32 = arith.constant 0 : i32
    %c0_i32_0 = arith.constant 0 : i32
    %c0_i32_1 = arith.constant 0 : i32
    return %c0_i32, %c0_i32_0 : i32, i32
  }
  func.func @transform_2(%arg0: i32) -> (i32, i32) {
    %c0_i32 = arith.constant 0 : i32
    %c0_i32_0 = arith.constant 0 : i32
    %c0_i32_1 = arith.constant 0 : i32
    return %c0_i32, %c0_i32_0 : i32, i32
  }
  func.func @transform_3(%arg0: i32) -> (i32, i32) {
    %c0_i32 = arith.constant 0 : i32
    %c0_i32_0 = arith.constant 0 : i32
    %c0_i32_1 = arith.constant 0 : i32
    return %c0_i32, %c0_i32_0 : i32, i32
  }
  func.func @transform_4(%arg0: i32) -> (i32, i32) {
    %c0_i32 = arith.constant 0 : i32
    %c0_i32_0 = arith.constant 0 : i32
    %c0_i32_1 = arith.constant 0 : i32
    return %c0_i32, %c0_i32_0 : i32, i32
  }
  func.func @transform_5(%arg0: i32) -> (i32, i32) {
    %c0_i32 = arith.constant 0 : i32
    %c0_i32_0 = arith.constant 0 : i32
    %c0_i32_1 = arith.constant 0 : i32
    return %c0_i32, %c0_i32_0 : i32, i32
  }
  func.func @transform_6(%arg0: i32) -> (i32, i32) {
    %c0_i32 = arith.constant 0 : i32
    %c0_i32_0 = arith.constant 0 : i32
    return %arg0, %c0_i32 : i32, i32
  }
}

</mosaic_0001>

<llo_original>
// kernel: squeeze.1
$region0: #{squeeze.1}
  %s0 = inlined_call_operand.vmem [shape: f32[36], index: 0, kind: input, shape index: {}]
  %s1 = inlined_call_operand.hbm [shape: f32[6,6], index: 1, kind: output, shape index: {}]
  $region1: #{squeeze.1} parent=0
    #allocation0 [shape = 'u8[4096]{0}', space=vmem, size = 0x1000, scoped, tag = 'operand span for operand 1']
    #allocation1 [shape = 's32[1]{0}', space=sflag, size = 0x4, scoped, tag = 'scoped memory for squeeze.1']
    #allocation2 [shape = 'u8[4096]{0}', space=vmem, size = 0x1000, scoped, tag = 'scoped mem for input reshape']
    %2 = vsyncpa [#allocation1], 0
    %s4 = sshll.u32 1, 1
    %s5 = ssub.s32 %s4, 1
    %v6 = vld [vmem:[%s0] sm:%s5]
    %7 = vst [vmem:[#allocation2] sm:%s5] %v6
    %v8 = vld [vmem:[#allocation2] sm:$0x1]
    %vm9 = vcmask 48128
    %10 = vst.msk [vmem:[#allocation0] sm:$0x1] %vm9, %v8
    %v11 = vld [vmem:[#allocation2] sm:$0x1]
    %12 = vrot.lane.b32.xlu0 %v11, 122
    %v13 = vpop.permute.xlu0 %12
    %vm14 = vcmask 48128
    %s15 = scalar_lea.vmem [#allocation0], 1
    %16 = vst.msk [vmem:[%s15] sm:$0x1] %vm14, %v13
    %v17 = vld [vmem:[#allocation2] sm:$0x1]
    %18 = vrot.lane.b32.xlu0 %v17, 116
    %v19 = vpop.permute.xlu0 %18
    %vm20 = vcmask 48128
    %s21 = scalar_lea.vmem [#allocation0], 2
    %22 = vst.msk [vmem:[%s21] sm:$0x1] %vm20, %v19
    %v23 = vld [vmem:[#allocation2] sm:$0x1]
    %24 = vrot.lane.b32.xlu0 %v23, 110
    %v25 = vpop.permute.xlu0 %24
    %vm26 = vcmask 48128
    %s27 = scalar_lea.vmem [#allocation0], 3
    %28 = vst.msk [vmem:[%s27] sm:$0x1] %vm26, %v25
    %v29 = vld [vmem:[#allocation2] sm:$0x1]
    %30 = vrot.lane.b32.xlu0 %v29, 104
    %v31 = vpop.permute.xlu0 %30
    %vm32 = vcmask 48128
    %s33 = scalar_lea.vmem [#allocation0], 4
    %34 = vst.msk [vmem:[%s33] sm:$0x1] %vm32, %v31
    %v35 = vld [vmem:[#allocation2] sm:$0x1]
    %36 = vrot.lane.b32.xlu0 %v35, 98
    %v37 = vpop.permute.xlu0 %36
    %vm38 = vcmask 48128
    %s39 = scalar_lea.vmem [#allocation0], 5
    %40 = vst.msk [vmem:[%s39] sm:$0x1] %vm38, %v37
    %s42 = ssub.s32 128, 128
    %43 = vsyncadd [#allocation1], %s42
    %s45 = sshll.u32 [#allocation0], 4
    %s46 = int_to_ptr.vmem [resolvable:$true] %s45
    %48 = dma.vmem_to_hbm [thread:$0]  %s46, 128, %s1, [#allocation1]
    %49 = dma.done [#allocation1], 128
    %50 = vsyncpa [#allocation1], 1

// kernel: policy_forward.1
$region0: #{policy_forward.1}
  #allocation0 [shape = 'u32[]', space=smem, size = 0x4, offset = 0x4, fixed_abs, tag = 'smem constant byte address 0x4 - core index']
  #allocation1 [shape = 'u32[144,128]{1,0:T(1,128)}', space=vmem, size = 0x12000, scoped, tag = 'internal scratch']
  %s0 = inlined_call_operand.vmem [shape: f32[8,128], index: 0, kind: input, shape index: {}]
  %s1 = inlined_call_operand.vmem [shape: bf16[128,400], index: 1, kind: input, shape index: {}]
  %s2 = inlined_call_operand.vmem [shape: bf16[400,288], index: 2, kind: input, shape index: {}]
  %s3 = inlined_call_operand.vmem [shape: bf16[288,120], index: 3, kind: input, shape index: {}]
  %s4 = inlined_call_operand.vmem [shape: bf16[120,128], index: 4, kind: input, shape index: {}]
  %s5 = inlined_call_operand.vmem [shape: f32[1,256], index: 5, kind: input, shape index: {}]
  %s6 = inlined_call_operand.vmem [shape: f32[8,128], index: 6, kind: output, shape index: {}]
  %s7 = sld [smem:[#allocation0]]
  $region34: #{policy_forward.1} parent=0
    _
  %s9 = ssub.s32 1, %s7
  %s10 = scalar_select 0, %s9, %s7
  // Predicated region
  $region2: #{policy_forward.1} parent=0 // pred_check
    _
  $region3: #{policy_forward.1} parent=0 // pred_check_branch
    %12 = sbr.rel (0) target = $region5
  $region4: #{policy_forward.1} parent=0 // pred_region
    _
  $region5: #{policy_forward.1} parent=0 // pred_fallthru
    _
  // Predicated region
  $region6: #{policy_forward.1} parent=0 // pred_check
    _
  $region7: #{policy_forward.1} parent=0 // pred_check_branch
    %14 = sbr.rel (0) target = $region9
  $region8: #{policy_forward.1} parent=0 // pred_region
    _
  $region9: #{policy_forward.1} parent=0 // pred_fallthru
    _
  // Predicated region
  $region10: #{policy_forward.1} parent=0 // pred_check
    _
  $region11: #{policy_forward.1} parent=0 // pred_check_branch
    %16 = sbr.rel (0) target = $region13
  $region12: #{policy_forward.1} parent=0 // pred_region
    _
  $region13: #{policy_forward.1} parent=0 // pred_fallthru
    _
  // Predicated region
  $region14: #{policy_forward.1} parent=0 // pred_check
    _
  $region15: #{policy_forward.1} parent=0 // pred_check_branch
    %18 = sbr.rel (0) target = $region17
  $region16: #{policy_forward.1} parent=0 // pred_region
    _
  $region17: #{policy_forward.1} parent=0 // pred_fallthru
    _
  // Predicated region
  $region18: #{policy_forward.1} parent=0 // pred_check
    _
  $region19: #{policy_forward.1} parent=0 // pred_check_branch
    %20 = sbr.rel (0) target = $region21
  $region20: #{policy_forward.1} parent=0 // pred_region
    _
  $region21: #{policy_forward.1} parent=0 // pred_fallthru
    _
  // Predicated region
  $region22: #{policy_forward.1} parent=0 // pred_check
    _
  $region23: #{policy_forward.1} parent=0 // pred_check_branch
    %22 = sbr.rel (0) target = $region25
  $region24: #{policy_forward.1} parent=0 // pred_region
    _
  $region25: #{policy_forward.1} parent=0 // pred_fallthru
    _
  %v23 = vld [vmem:[%s0] sm:$0xff]
  %v24 = vld [vmem:[%s1] sm:$0xff]
  %v25 = vld [vmem:[%s1 + $0x8] sm:$0xff]
  %v26 = vld [vmem:[%s1 + $0x10] sm:$0xff]
  %v27 = vld [vmem:[%s1 + $0x18] sm:$0xff]
  %v28 = vld [vmem:[%s1 + $0x20] sm:$0xff]
  %v29 = vld [vmem:[%s1 + $0x28] sm:$0xff]
  %v30 = vld [vmem:[%s1 + $0x30] sm:$0xff]
  %v31 = vld [vmem:[%s1 + $0x38] sm:$0xff]
  %v32 = vld [vmem:[%s1 + $0x40] sm:$0xff]
  %v33 = vld [vmem:[%s1 + $0x48] sm:$0xff]
  %v34 = vld [vmem:[%s1 + $0x50] sm:$0xff]
  %v35 = vld [vmem:[%s1 + $0x58] sm:$0xff]
  %v36 = vld [vmem:[%s1 + $0x60] sm:$0xff]
  %v37 = vld [vmem:[%s1 + $0x68] sm:$0xff]
  %v38 = vld [vmem:[%s1 + $0x70] sm:$0xff]
  %v39 = vld [vmem:[%s1 + $0x78] sm:$0xff]
  %v40 = vld [vmem:[%s1 + $0x80] sm:$0xff]
  %v41 = vld [vmem:[%s1 + $0x88] sm:$0xff]
  %v42 = vld [vmem:[%s1 + $0x90] sm:$0xff]
  %v43 = vld [vmem:[%s1 + $0x98] sm:$0xff]
  %v44 = vld [vmem:[%s1 + $0xa0] sm:$0xff]
  %v45 = vld [vmem:[%s1 + $0xa8] sm:$0xff]
  %v46 = vld [vmem:[%s1 + $0xb0] sm:$0xff]
  %v47 = vld [vmem:[%s1 + $0xb8] sm:$0xff]
  %v48 = vld [vmem:[%s1 + $0xc0] sm:$0xff]
  %v49 = vld [vmem:[%s1 + $0xc8] sm:$0xff]
  %v50 = vld [vmem:[%s1 + $0xd0] sm:$0xff]
  %v51 = vld [vmem:[%s1 + $0xd8] sm:$0xff]
  %v52 = vld [vmem:[%s1 + $0xe0] sm:$0xff]
  %v53 = vld [vmem:[%s1 + $0xe8] sm:$0xff]
  %v54 = vld [vmem:[%s1 + $0xf0] sm:$0xff]
  %v55 = vld [vmem:[%s1 + $0xf8] sm:$0xff]
  %v56 = vunpack.c.l.bf16 %v24
  %v57 = vunpack.c.h.bf16 %v24
  %v58 = vunpack.c.l.bf16 %v25
  %v59 = vunpack.c.h.bf16 %v25
  %v60 = vunpack.c.l.bf16 %v26
  %v61 = vunpack.c.h.bf16 %v26
  %v62 = vunpack.c.l.bf16 %v27
  %v63 = vunpack.c.h.bf16 %v27
  %v64 = vunpack.c.l.bf16 %v28
  %v65 = vunpack.c.h.bf16 %v28
  %v66 = vunpack.c.l.bf16 %v29
  %v67 = vunpack.c.h.bf16 %v29
  %v68 = vunpack.c.l.bf16 %v30
  %v69 = vunpack.c.h.bf16 %v30
  %v70 = vunpack.c.l.bf16 %v31
  %v71 = vunpack.c.h.bf16 %v31
  %v72 = vunpack.c.l.bf16 %v32
  %v73 = vunpack.c.h.bf16 %v32
  %v74 = vunpack.c.l.bf16 %v33
  %v75 = vunpack.c.h.bf16 %v33
  %v76 = vunpack.c.l.bf16 %v34
  %v77 = vunpack.c.h.bf16 %v34
  %v78 = vunpack.c.l.bf16 %v35
  %v79 = vunpack.c.h.bf16 %v35
  %v80 = vunpack.c.l.bf16 %v36
  %v81 = vunpack.c.h.bf16 %v36
  %v82 = vunpack.c.l.bf16 %v37
  %v83 = vunpack.c.h.bf16 %v37
  %v84 = vunpack.c.l.bf16 %v38
  %v85 = vunpack.c.h.bf16 %v38
  %v86 = vunpack.c.l.bf16 %v39
  %v87 = vunpack.c.h.bf16 %v39
  %v88 = vunpack.c.l.bf16 %v40
  %v89 = vunpack.c.h.bf16 %v40
  %v90 = vunpack.c.l.bf16 %v41
  %v91 = vunpack.c.h.bf16 %v41
  %v92 = vunpack.c.l.bf16 %v42
  %v93 = vunpack.c.h.bf16 %v42
  %v94 = vunpack.c.l.bf16 %v43
  %v95 = vunpack.c.h.bf16 %v43
  %v96 = vunpack.c.l.bf16 %v44
  %v97 = vunpack.c.h.bf16 %v44
  %v98 = vunpack.c.l.bf16 %v45
  %v99 = vunpack.c.h.bf16 %v45
  %v100 = vunpack.c.l.bf16 %v46
  %v101 = vunpack.c.h.bf16 %v46
  %v102 = vunpack.c.l.bf16 %v47
  %v103 = vunpack.c.h.bf16 %v47
  %v104 = vunpack.c.l.bf16 %v48
  %v105 = vunpack.c.h.bf16 %v48
  %v106 = vunpack.c.l.bf16 %v49
  %v107 = vunpack.c.h.bf16 %v49
  %v108 = vunpack.c.l.bf16 %v50
  %v109 = vunpack.c.h.bf16 %v50
  %v110 = vunpack.c.l.bf16 %v51
  %v111 = vunpack.c.h.bf16 %v51
  %v112 = vunpack.c.l.bf16 %v52
  %v113 = vunpack.c.h.bf16 %v52
  %v114 = vunpack.c.l.bf16 %v53
  %v115 = vunpack.c.h.bf16 %v53
  %v116 = vunpack.c.l.bf16 %v54
  %v117 = vunpack.c.h.bf16 %v54
  %v118 = vunpack.c.l.bf16 %v55
  %v119 = vunpack.c.h.bf16 %v55
  %v120 = vld [vmem:[%s2] sm:$0xff]
  %v121 = vld [vmem:[%s2 + $0x8] sm:$0xf]
  %v122 = vld [vmem:[%s2 + $0xc] sm:$0xff]
  %v123 = vld [vmem:[%s2 + $0x14] sm:$0xf]
  %v124 = vld [vmem:[%s2 + $0x18] sm:$0xff]
  %v125 = vld [vmem:[%s2 + $0x20] sm:$0xf]
  %v126 = vld [vmem:[%s2 + $0x24] sm:$0xff]
  %v127 = vld [vmem:[%s2 + $0x2c] sm:$0xf]
  %v128 = vld [vmem:[%s2 + $0x30] sm:$0xff]
  %v129 = vld [vmem:[%s2 + $0x38] sm:$0xf]
  %v130 = vld [vmem:[%s2 + $0x3c] sm:$0xff]
  %v131 = vld [vmem:[%s2 + $0x44] sm:$0xf]
  %v132 = vld [vmem:[%s2 + $0x48] sm:$0xff]
  %v133 = vld [vmem:[%s2 + $0x50] sm:$0xf]
  %v134 = vld [vmem:[%s2 + $0x54] sm:$0xff]
  %v135 = vld [vmem:[%s2 + $0x5c] sm:$0xf]
  %v136 = vld [vmem:[%s2 + $0x60] sm:$0xff]
  %v137 = vld [vmem:[%s2 + $0x68] sm:$0xf]
  %v138 = vld [vmem:[%s2 + $0x6c] sm:$0xff]
  %v139 = vld [vmem:[%s2 + $0x74] sm:$0xf]
  %v140 = vld [vmem:[%s2 + $0x78] sm:$0xff]
  %v141 = vld [vmem:[%s2 + $0x80] sm:$0xf]
  %v142 = vld [vmem:[%s2 + $0x84] sm:$0xff]
  %v143 = vld [vmem:[%s2 + $0x8c] sm:$0xf]
  %v144 = vld [vmem:[%s2 + $0x90] sm:$0xff]
  %v145 = vld [vmem:[%s2 + $0x98] sm:$0xf]
  %v146 = vld [vmem:[%s2 + $0x9c] sm:$0xff]
  %v147 = vld [vmem:[%s2 + $0xa4] sm:$0xf]
  %v148 = vld [vmem:[%s2 + $0xa8] sm:$0xff]
  %v149 = vld [vmem:[%s2 + $0xb0] sm:$0xf]
  %v150 = vld [vmem:[%s2 + $0xb4] sm:$0xff]
  %v151 = vld [vmem:[%s2 + $0xbc] sm:$0xf]
  %v152 = vld [vmem:[%s2 + $0xc0] sm:$0xff]
  %v153 = vld [vmem:[%s2 + $0xc8] sm:$0xf]
  %v154 = vld [vmem:[%s2 + $0xcc] sm:$0xff]
  %v155 = vld [vmem:[%s2 + $0xd4] sm:$0xf]
  %v156 = vld [vmem:[%s2 + $0xd8] sm:$0xff]
  %v157 = vld [vmem:[%s2 + $0xe0] sm:$0xf]
  %v158 = vld [vmem:[%s2 + $0xe4] sm:$0xff]
  %v159 = vld [vmem:[%s2 + $0xec] sm:$0xf]
  %v160 = vld [vmem:[%s2 + $0xf0] sm:$0xff]
  %v161 = vld [vmem:[%s2 + $0xf8] sm:$0xf]
  %v162 = vld [vmem:[%s2 + $0xfc] sm:$0xff]
  %v163 = vld [vmem:[%s2 + $0x104] sm:$0xf]
  %v164 = vld [vmem:[%s2 + $0x108] sm:$0xff]
  %v165 = vld [vmem:[%s2 + $0x110] sm:$0xf]
  %v166 = vld [vmem:[%s2 + $0x114] sm:$0xff]
  %v167 = vld [vmem:[%s2 + $0x11c] sm:$0xf]
  %v168 = vld [vmem:[%s2 + $0x120] sm:$0xff]
  %v169 = vld [vmem:[%s2 + $0x128] sm:$0xf]
  %v170 = vld [vmem:[%s2 + $0x12c] sm:$0xff]
  %v171 = vld [vmem:[%s2 + $0x134] sm:$0xf]
  %v172 = vld [vmem:[%s2 + $0x138] sm:$0xff]
  %v173 = vld [vmem:[%s2 + $0x140] sm:$0xf]
  %v174 = vld [vmem:[%s2 + $0x144] sm:$0xff]
  %v175 = vld [vmem:[%s2 + $0x14c] sm:$0xf]
  %v176 = vld [vmem:[%s2 + $0x150] sm:$0xff]
  %v177 = vld [vmem:[%s2 + $0x158] sm:$0xf]
  %v178 = vld [vmem:[%s2 + $0x15c] sm:$0xff]
  %v179 = vld [vmem:[%s2 + $0x164] sm:$0xf]
  %v180 = vld [vmem:[%s2 + $0x168] sm:$0xff]
  %v181 = vld [vmem:[%s2 + $0x170] sm:$0xf]
  %v182 = vld [vmem:[%s2 + $0x174] sm:$0xff]
  %v183 = vld [vmem:[%s2 + $0x17c] sm:$0xf]
  %v184 = vld [vmem:[%s2 + $0x180] sm:$0xff]
  %v185 = vld [vmem:[%s2 + $0x188] sm:$0xf]
  %v186 = vld [vmem:[%s2 + $0x18c] sm:$0xff]
  %v187 = vld [vmem:[%s2 + $0x194] sm:$0xf]
  %v188 = vld [vmem:[%s2 + $0x198] sm:$0xff]
  %v189 = vld [vmem:[%s2 + $0x1a0] sm:$0xf]
  %v190 = vld [vmem:[%s2 + $0x1a4] sm:$0xff]
  %v191 = vld [vmem:[%s2 + $0x1ac] sm:$0xf]
  %v192 = vld [vmem:[%s2 + $0x1b0] sm:$0xff]
  %v193 = vld [vmem:[%s2 + $0x1b8] sm:$0xf]
  %v194 = vld [vmem:[%s2 + $0x1bc] sm:$0xff]
  %v195 = vld [vmem:[%s2 + $0x1c4] sm:$0xf]
  %v196 = vld [vmem:[%s2 + $0x1c8] sm:$0xff]
  %v197 = vld [vmem:[%s2 + $0x1d0] sm:$0xf]
  %v198 = vld [vmem:[%s2 + $0x1d4] sm:$0xff]
  %v199 = vld [vmem:[%s2 + $0x1dc] sm:$0xf]
  %v200 = vld [vmem:[%s2 + $0x1e0] sm:$0xff]
  %v201 = vld [vmem:[%s2 + $0x1e8] sm:$0xf]
  %v202 = vld [vmem:[%s2 + $0x1ec] sm:$0xff]
  %v203 = vld [vmem:[%s2 + $0x1f4] sm:$0xf]
  %v204 = vld [vmem:[%s2 + $0x1f8] sm:$0xff]
  %v205 = vld [vmem:[%s2 + $0x200] sm:$0xf]
  %v206 = vld [vmem:[%s2 + $0x204] sm:$0xff]
  %v207 = vld [vmem:[%s2 + $0x20c] sm:$0xf]
  %v208 = vld [vmem:[%s2 + $0x210] sm:$0xff]
  %v209 = vld [vmem:[%s2 + $0x218] sm:$0xf]
  %v210 = vld [vmem:[%s2 + $0x21c] sm:$0xff]
  %v211 = vld [vmem:[%s2 + $0x224] sm:$0xf]
  %v212 = vld [vmem:[%s2 + $0x228] sm:$0xff]
  %v213 = vld [vmem:[%s2 + $0x230] sm:$0xf]
  %v214 = vld [vmem:[%s2 + $0x234] sm:$0xff]
  %v215 = vld [vmem:[%s2 + $0x23c] sm:$0xf]
  %v216 = vld [vmem:[%s2 + $0x240] sm:$0xff]
  %v217 = vld [vmem:[%s2 + $0x248] sm:$0xf]
  %v218 = vld [vmem:[%s2 + $0x24c] sm:$0xff]
  %v219 = vld [vmem:[%s2 + $0x254] sm:$0xf]
  %v220 = vunpack.c.l.bf16 %v120
  %v221 = vunpack.c.h.bf16 %v120
  %v222 = vunpack.c.l.bf16 %v121
  %v223 = vunpack.c.l.bf16 %v122
  %v224 = vunpack.c.h.bf16 %v122
  %v225 = vunpack.c.l.bf16 %v123
  %v226 = vunpack.c.l.bf16 %v124
  %v227 = vunpack.c.h.bf16 %v124
  %v228 = vunpack.c.l.bf16 %v125
  %v229 = vunpack.c.l.bf16 %v126
  %v230 = vunpack.c.h.bf16 %v126
  %v231 = vunpack.c.l.bf16 %v127
  %v232 = vunpack.c.l.bf16 %v128
  %v233 = vunpack.c.h.bf16 %v128
  %v234 = vunpack.c.l.bf16 %v129
  %v235 = vunpack.c.l.bf16 %v130
  %v236 = vunpack.c.h.bf16 %v130
  %v237 = vunpack.c.l.bf16 %v131
  %v238 = vunpack.c.l.bf16 %v132
  %v239 = vunpack.c.h.bf16 %v132
  %v240 = vunpack.c.l.bf16 %v133
  %v241 = vunpack.c.l.bf16 %v134
  %v242 = vunpack.c.h.bf16 %v134
  %v243 = vunpack.c.l.bf16 %v135
  %v244 = vunpack.c.l.bf16 %v136
  %v245 = vunpack.c.h.bf16 %v136
  %v246 = vunpack.c.l.bf16 %v137
  %v247 = vunpack.c.l.bf16 %v138
  %v248 = vunpack.c.h.bf16 %v138
  %v249 = vunpack.c.l.bf16 %v139
  %v250 = vunpack.c.l.bf16 %v140
  %v251 = vunpack.c.h.bf16 %v140
  %v252 = vunpack.c.l.bf16 %v141
  %v253 = vunpack.c.l.bf16 %v142
  %v254 = vunpack.c.h.bf16 %v142
  %v255 = vunpack.c.l.bf16 %v143
  %v256 = vunpack.c.l.bf16 %v144
  %v257 = vunpack.c.h.bf16 %v144
  %v258 = vunpack.c.l.bf16 %v145
  %v259 = vunpack.c.l.bf16 %v146
  %v260 = vunpack.c.h.bf16 %v146
  %v261 = vunpack.c.l.bf16 %v147
  %v262 = vunpack.c.l.bf16 %v148
  %v263 = vunpack.c.h.bf16 %v148
  %v264 = vunpack.c.l.bf16 %v149
  %v265 = vunpack.c.l.bf16 %v150
  %v266 = vunpack.c.h.bf16 %v150
  %v267 = vunpack.c.l.bf16 %v151
  %v268 = vunpack.c.l.bf16 %v152
  %v269 = vunpack.c.h.bf16 %v152
  %v270 = vunpack.c.l.bf16 %v153
  %v271 = vunpack.c.l.bf16 %v154
  %v272 = vunpack.c.h.bf16 %v154
  %v273 = vunpack.c.l.bf16 %v155
  %v274 = vunpack.c.l.bf16 %v156
  %v275 = vunpack.c.h.bf16 %v156
  %v276 = vunpack.c.l.bf16 %v157
  %v277 = vunpack.c.l.bf16 %v158
  %v278 = vunpack.c.h.bf16 %v158
  %v279 = vunpack.c.l.bf16 %v159
  %v280 = vunpack.c.l.bf16 %v160
  %v281 = vunpack.c.h.bf16 %v160
  %v282 = vunpack.c.l.bf16 %v161
  %v283 = vunpack.c.l.bf16 %v162
  %v284 = vunpack.c.h.bf16 %v162
  %v285 = vunpack.c.l.bf16 %v163
  %v286 = vunpack.c.l.bf16 %v164
  %v287 = vunpack.c.h.bf16 %v164
  %v288 = vunpack.c.l.bf16 %v165
  %v289 = vunpack.c.l.bf16 %v166
  %v290 = vunpack.c.h.bf16 %v166
  %v291 = vunpack.c.l.bf16 %v167
  %v292 = vunpack.c.l.bf16 %v168
  %v293 = vunpack.c.h.bf16 %v168
  %v294 = vunpack.c.l.bf16 %v169
  %v295 = vunpack.c.l.bf16 %v170
  %v296 = vunpack.c.h.bf16 %v170
  %v297 = vunpack.c.l.bf16 %v171
  %v298 = vunpack.c.l.bf16 %v172
  %v299 = vunpack.c.h.bf16 %v172
  %v300 = vunpack.c.l.bf16 %v173
  %v301 = vunpack.c.l.bf16 %v174
  %v302 = vunpack.c.h.bf16 %v174
  %v303 = vunpack.c.l.bf16 %v175
  %v304 = vunpack.c.l.bf16 %v176
  %v305 = vunpack.c.h.bf16 %v176
  %v306 = vunpack.c.l.bf16 %v177
  %v307 = vunpack.c.l.bf16 %v178
  %v308 = vunpack.c.h.bf16 %v178
  %v309 = vunpack.c.l.bf16 %v179
  %v310 = vunpack.c.l.bf16 %v180
  %v311 = vunpack.c.h.bf16 %v180
  %v312 = vunpack.c.l.bf16 %v181
  %v313 = vunpack.c.l.bf16 %v182
  %v314 = vunpack.c.h.bf16 %v182
  %v315 = vunpack.c.l.bf16 %v183
  %v316 = vunpack.c.l.bf16 %v184
  %v317 = vunpack.c.h.bf16 %v184
  %v318 = vunpack.c.l.bf16 %v185
  %v319 = vunpack.c.l.bf16 %v186
  %v320 = vunpack.c.h.bf16 %v186
  %v321 = vunpack.c.l.bf16 %v187
  %v322 = vunpack.c.l.bf16 %v188
  %v323 = vunpack.c.h.bf16 %v188
  %v324 = vunpack.c.l.bf16 %v189
  %v325 = vunpack.c.l.bf16 %v190
  %v326 = vunpack.c.h.bf16 %v190
  %v327 = vunpack.c.l.bf16 %v191
  %v328 = vunpack.c.l.bf16 %v192
  %v329 = vunpack.c.h.bf16 %v192
  %v330 = vunpack.c.l.bf16 %v193
  %v331 = vunpack.c.l.bf16 %v194
  %v332 = vunpack.c.h.bf16 %v194
  %v333 = vunpack.c.l.bf16 %v195
  %v334 = vunpack.c.l.bf16 %v196
  %v335 = vunpack.c.h.bf16 %v196
  %v336 = vunpack.c.l.bf16 %v197
  %v337 = vunpack.c.l.bf16 %v198
  %v338 = vunpack.c.h.bf16 %v198
  %v339 = vunpack.c.l.bf16 %v199
  %v340 = vunpack.c.l.bf16 %v200
  %v341 = vunpack.c.h.bf16 %v200
  %v342 = vunpack.c.l.bf16 %v201
  %v343 = vunpack.c.l.bf16 %v202
  %v344 = vunpack.c.h.bf16 %v202
  %v345 = vunpack.c.l.bf16 %v203
  %v346 = vunpack.c.l.bf16 %v204
  %v347 = vunpack.c.h.bf16 %v204
  %v348 = vunpack.c.l.bf16 %v205
  %v349 = vunpack.c.l.bf16 %v206
  %v350 = vunpack.c.h.bf16 %v206
  %v351 = vunpack.c.l.bf16 %v207
  %v352 = vunpack.c.l.bf16 %v208
  %v353 = vunpack.c.h.bf16 %v208
  %v354 = vunpack.c.l.bf16 %v209
  %v355 = vunpack.c.l.bf16 %v210
  %v356 = vunpack.c.h.bf16 %v210
  %v357 = vunpack.c.l.bf16 %v211
  %v358 = vunpack.c.l.bf16 %v212
  %v359 = vunpack.c.h.bf16 %v212
  %v360 = vunpack.c.l.bf16 %v213
  %v361 = vunpack.c.l.bf16 %v214
  %v362 = vunpack.c.h.bf16 %v214
  %v363 = vunpack.c.l.bf16 %v215
  %v364 = vunpack.c.l.bf16 %v216
  %v365 = vunpack.c.h.bf16 %v216
  %v366 = vunpack.c.l.bf16 %v217
  %v367 = vunpack.c.l.bf16 %v218
  %v368 = vunpack.c.h.bf16 %v218
  %v369 = vunpack.c.l.bf16 %v219
  %v370 = vld [vmem:[%s3] sm:$0xf]
  %v371 = vld [vmem:[%s3 + $0x4] sm:$0xf]
  %v372 = vld [vmem:[%s3 + $0x8] sm:$0xf]
  %v373 = vld [vmem:[%s3 + $0xc] sm:$0xf]
  %v374 = vld [vmem:[%s3 + $0x10] sm:$0xf]
  %v375 = vld [vmem:[%s3 + $0x14] sm:$0xf]
  %v376 = vld [vmem:[%s3 + $0x18] sm:$0xf]
  %v377 = vld [vmem:[%s3 + $0x1c] sm:$0xf]
  %v378 = vld [vmem:[%s3 + $0x20] sm:$0xf]
  %v379 = vld [vmem:[%s3 + $0x24] sm:$0xf]
  %v380 = vld [vmem:[%s3 + $0x28] sm:$0xf]
  %v381 = vld [vmem:[%s3 + $0x2c] sm:$0xf]
  %v382 = vld [vmem:[%s3 + $0x30] sm:$0xf]
  %v383 = vld [vmem:[%s3 + $0x34] sm:$0xf]
  %v384 = vld [vmem:[%s3 + $0x38] sm:$0xf]
  %v385 = vld [vmem:[%s3 + $0x3c] sm:$0xf]
  %v386 = vld [vmem:[%s3 + $0x40] sm:$0xf]
  %v387 = vld [vmem:[%s3 + $0x44] sm:$0xf]
  %v388 = vld [vmem:[%s3 + $0x48] sm:$0xf]
  %v389 = vld [vmem:[%s3 + $0x4c] sm:$0xf]
  %v390 = vld [vmem:[%s3 + $0x50] sm:$0xf]
  %v391 = vld [vmem:[%s3 + $0x54] sm:$0xf]
  %v392 = vld [vmem:[%s3 + $0x58] sm:$0xf]
  %v393 = vld [vmem:[%s3 + $0x5c] sm:$0xf]
  %v394 = vld [vmem:[%s3 + $0x60] sm:$0xf]
  %v395 = vld [vmem:[%s3 + $0x64] sm:$0xf]
  %v396 = vld [vmem:[%s3 + $0x68] sm:$0xf]
  %v397 = vld [vmem:[%s3 + $0x6c] sm:$0xf]
  %v398 = vld [vmem:[%s3 + $0x70] sm:$0xf]
  %v399 = vld [vmem:[%s3 + $0x74] sm:$0xf]
  %v400 = vld [vmem:[%s3 + $0x78] sm:$0xf]
  %v401 = vld [vmem:[%s3 + $0x7c] sm:$0xf]
  %v402 = vld [vmem:[%s3 + $0x80] sm:$0xf]
  %v403 = vld [vmem:[%s3 + $0x84] sm:$0xf]
  %v404 = vld [vmem:[%s3 + $0x88] sm:$0xf]
  %v405 = vld [vmem:[%s3 + $0x8c] sm:$0xf]
  %v406 = vunpack.c.l.bf16 %v370
  %v407 = vunpack.c.l.bf16 %v371
  %v408 = vunpack.c.l.bf16 %v372
  %v409 = vunpack.c.l.bf16 %v373
  %v410 = vunpack.c.l.bf16 %v374
  %v411 = vunpack.c.l.bf16 %v375
  %v412 = vunpack.c.l.bf16 %v376
  %v413 = vunpack.c.l.bf16 %v377
  %v414 = vunpack.c.l.bf16 %v378
  %v415 = vunpack.c.l.bf16 %v379
  %v416 = vunpack.c.l.bf16 %v380
  %v417 = vunpack.c.l.bf16 %v381
  %v418 = vunpack.c.l.bf16 %v382
  %v419 = vunpack.c.l.bf16 %v383
  %v420 = vunpack.c.l.bf16 %v384
  %v421 = vunpack.c.l.bf16 %v385
  %v422 = vunpack.c.l.bf16 %v386
  %v423 = vunpack.c.l.bf16 %v387
  %v424 = vunpack.c.l.bf16 %v388
  %v425 = vunpack.c.l.bf16 %v389
  %v426 = vunpack.c.l.bf16 %v390
  %v427 = vunpack.c.l.bf16 %v391
  %v428 = vunpack.c.l.bf16 %v392
  %v429 = vunpack.c.l.bf16 %v393
  %v430 = vunpack.c.l.bf16 %v394
  %v431 = vunpack.c.l.bf16 %v395
  %v432 = vunpack.c.l.bf16 %v396
  %v433 = vunpack.c.l.bf16 %v397
  %v434 = vunpack.c.l.bf16 %v398
  %v435 = vunpack.c.l.bf16 %v399
  %v436 = vunpack.c.l.bf16 %v400
  %v437 = vunpack.c.l.bf16 %v401
  %v438 = vunpack.c.l.bf16 %v402
  %v439 = vunpack.c.l.bf16 %v403
  %v440 = vunpack.c.l.bf16 %v404
  %v441 = vunpack.c.l.bf16 %v405
  %v442 = vld [vmem:[%s4] sm:$0xf]
  %v443 = vld [vmem:[%s4 + $0x4] sm:$0xf]
  %v444 = vld [vmem:[%s4 + $0x8] sm:$0xf]
  %v445 = vld [vmem:[%s4 + $0xc] sm:$0xf]
  %v446 = vld [vmem:[%s4 + $0x10] sm:$0xf]
  %v447 = vld [vmem:[%s4 + $0x14] sm:$0xf]
  %v448 = vld [vmem:[%s4 + $0x18] sm:$0xf]
  %v449 = vld [vmem:[%s4 + $0x1c] sm:$0xf]
  %v450 = vld [vmem:[%s4 + $0x20] sm:$0xf]
  %v451 = vld [vmem:[%s4 + $0x24] sm:$0xf]
  %v452 = vld [vmem:[%s4 + $0x28] sm:$0xf]
  %v453 = vld [vmem:[%s4 + $0x2c] sm:$0xf]
  %v454 = vld [vmem:[%s4 + $0x30] sm:$0xf]
  %v455 = vld [vmem:[%s4 + $0x34] sm:$0xf]
  %v456 = vld [vmem:[%s4 + $0x38] sm:$0xf]
  %v457 = vunpack.c.l.bf16 %v442
  %v458 = vunpack.c.l.bf16 %v443
  %v459 = vunpack.c.l.bf16 %v444
  %v460 = vunpack.c.l.bf16 %v445
  %v461 = vunpack.c.l.bf16 %v446
  %v462 = vunpack.c.l.bf16 %v447
  %v463 = vunpack.c.l.bf16 %v448
  %v464 = vunpack.c.l.bf16 %v449
  %v465 = vunpack.c.l.bf16 %v450
  %v466 = vunpack.c.l.bf16 %v451
  %v467 = vunpack.c.l.bf16 %v452
  %v468 = vunpack.c.l.bf16 %v453
  %v469 = vunpack.c.l.bf16 %v454
  %v470 = vunpack.c.l.bf16 %v455
  %v471 = vunpack.c.l.bf16 %v456
  %v472 = vld [vmem:[%s5] sm:$0x1]
  %v473 = vld [vmem:[%s5 + $0x1] sm:$0x1]
  %474 = vmatprep.subr.mxu0 %v117
  %475 = vmatpush1.msra.mxu0 %v116
  %476 = vmatprep.subr.mxu0 %v113
  %477 = vmatpush1.msra.mxu0 %v112
  %478 = vmatprep.subr.mxu0 %v109
  %479 = vmatpush1.msra.mxu0 %v108
  %480 = vmatprep.subr.mxu0 %v105
  %481 = vmatpush1.msra.mxu0 %v104
  %482 = vmatprep.subr.mxu0 %v101
  %483 = vmatpush1.msra.mxu0 %v100
  %484 = vmatprep.subr.mxu0 %v97
  %485 = vmatpush1.msra.mxu0 %v96
  %486 = vmatprep.subr.mxu0 %v93
  %487 = vmatpush1.msra.mxu0 %v92
  %488 = vmatprep.subr.mxu0 %v89
  %489 = vmatpush1.msra.mxu0 %v88
  %490 = vmatprep.subr.mxu0 %v85
  %491 = vmatpush1.msra.mxu0 %v84
  %492 = vmatprep.subr.mxu0 %v81
  %493 = vmatpush1.msra.mxu0 %v80
  %494 = vmatprep.subr.mxu0 %v77
  %495 = vmatpush1.msra.mxu0 %v76
  %496 = vmatprep.subr.mxu0 %v73
  %497 = vmatpush1.msra.mxu0 %v72
  %498 = vmatprep.subr.mxu0 %v69
  %499 = vmatpush1.msra.mxu0 %v68
  %500 = vmatprep.subr.mxu0 %v65
  %501 = vmatpush1.msra.mxu0 %v64
  %502 = vmatprep.subr.mxu0 %v61
  %503 = vmatpush1.msra.mxu0 %v60
  %504 = vmatprep.subr.mxu0 %v57
  %505 = vmatpush1.msra.mxu0 %v56
  %506 = vmatprep.subr.mxu0 0.0
  %507 = vmatpush2.msra.mxu0 0.0
  %508 = vmatprep.subr.mxu0 0.0
  %509 = vmatpush2.msra.mxu0 0.0
  %510 = vmatprep.subr.mxu0 0.0
  %511 = vmatpush2.msra.mxu0 0.0
  %512 = vmatprep.subr.mxu0 0.0
  %513 = vmatpush2.msra.mxu0 0.0
  %514 = vmatprep.subr.mxu0 0.0
  %515 = vmatpush2.msra.mxu0 0.0
  %516 = vmatprep.subr.mxu0 0.0
  %517 = vmatpush2.msra.mxu0 0.0
  %518 = vmatprep.subr.mxu0 0.0
  %519 = vmatpush2.msra.mxu0 0.0
  %520 = vmatprep.subr.mxu0 0.0
  %521 = vmatpush2.msra.mxu0 0.0
  %522 = vmatprep.subr.mxu0 0.0
  %523 = vmatpush2.msra.mxu0 0.0
  %524 = vmatprep.subr.mxu0 0.0
  %525 = vmatpush2.msra.mxu0 0.0
  %526 = vmatprep.subr.mxu0 0.0
  %527 = vmatpush2.msra.mxu0 0.0
  %528 = vmatprep.subr.mxu0 0.0
  %529 = vmatpush2.msra.mxu0 0.0
  %530 = vmatprep.subr.mxu0 0.0
  %531 = vmatpush2.msra.mxu0 0.0
  %532 = vmatprep.subr.mxu0 0.0
  %533 = vmatpush2.msra.mxu0 0.0
  %534 = vmatprep.subr.mxu0 0.0
  %535 = vmatpush2.msra.mxu0 0.0
  %536 = vmatprep.subr.mxu0 0.0
  %537 = vmatpush2.msra.mxu0 0.0
  %538 = vmatprep.mubr.f32.mxu0 0.0
  %539 = vmatmul.mubr.f32.gmra.mxu0 %v23
  %v540 = vpop.f32.mrf.mxu0
  %v541 = vadd.f32 0.0, %v540
  %v542 = vpop.f32.mrf.mxu0
  %v543 = vadd.f32 0.0, %v542
  %544 = vdwg.mxu0
  %545 = vmatprep.subr.mxu0 %v119
  %546 = vmatpush1.msra.mxu0 %v118
  %547 = vmatprep.subr.mxu0 %v115
  %548 = vmatpush1.msra.mxu0 %v114
  %549 = vmatprep.subr.mxu0 %v111
  %550 = vmatpush1.msra.mxu0 %v110
  %551 = vmatprep.subr.mxu0 %v107
  %552 = vmatpush1.msra.mxu0 %v106
  %553 = vmatprep.subr.mxu0 %v103
  %554 = vmatpush1.msra.mxu0 %v102
  %555 = vmatprep.subr.mxu0 %v99
  %556 = vmatpush1.msra.mxu0 %v98
  %557 = vmatprep.subr.mxu0 %v95
  %558 = vmatpush1.msra.mxu0 %v94
  %559 = vmatprep.subr.mxu0 %v91
  %560 = vmatpush1.msra.mxu0 %v90
  %561 = vmatprep.subr.mxu0 %v87
  %562 = vmatpush1.msra.mxu0 %v86
  %563 = vmatprep.subr.mxu0 %v83
  %564 = vmatpush1.msra.mxu0 %v82
  %565 = vmatprep.subr.mxu0 %v79
  %566 = vmatpush1.msra.mxu0 %v78
  %567 = vmatprep.subr.mxu0 %v75
  %568 = vmatpush1.msra.mxu0 %v74
  %569 = vmatprep.subr.mxu0 %v71
  %570 = vmatpush1.msra.mxu0 %v70
  %571 = vmatprep.subr.mxu0 %v67
  %572 = vmatpush1.msra.mxu0 %v66
  %573 = vmatprep.subr.mxu0 %v63
  %574 = vmatpush1.msra.mxu0 %v62
  %575 = vmatprep.subr.mxu0 %v59
  %576 = vmatpush1.msra.mxu0 %v58
  %577 = vmatprep.subr.mxu0 0.0
  %578 = vmatpush2.msra.mxu0 0.0
  %579 = vmatprep.subr.mxu0 0.0
  %580 = vmatpush2.msra.mxu0 0.0
  %581 = vmatprep.subr.mxu0 0.0
  %582 = vmatpush2.msra.mxu0 0.0
  %583 = vmatprep.subr.mxu0 0.0
  %584 = vmatpush2.msra.mxu0 0.0
  %585 = vmatprep.subr.mxu0 0.0
  %586 = vmatpush2.msra.mxu0 0.0
  %587 = vmatprep.subr.mxu0 0.0
  %588 = vmatpush2.msra.mxu0 0.0
  %589 = vmatprep.subr.mxu0 0.0
  %590 = vmatpush2.msra.mxu0 0.0
  %591 = vmatprep.subr.mxu0 0.0
  %592 = vmatpush2.msra.mxu0 0.0
  %593 = vmatprep.subr.mxu0 0.0
  %594 = vmatpush2.msra.mxu0 0.0
  %595 = vmatprep.subr.mxu0 0.0
  %596 = vmatpush2.msra.mxu0 0.0
  %597 = vmatprep.subr.mxu0 0.0
  %598 = vmatpush2.msra.mxu0 0.0
  %599 = vmatprep.subr.mxu0 0.0
  %600 = vmatpush2.msra.mxu0 0.0
  %601 = vmatprep.subr.mxu0 0.0
  %602 = vmatpush2.msra.mxu0 0.0
  %603 = vmatprep.subr.mxu0 0.0
  %604 = vmatpush2.msra.mxu0 0.0
  %605 = vmatprep.subr.mxu0 0.0
  %606 = vmatpush2.msra.mxu0 0.0
  %607 = vmatprep.subr.mxu0 0.0
  %608 = vmatpush2.msra.mxu0 0.0
  %609 = vmatprep.mubr.f32.mxu0 0.0
  %610 = vmatmul.mubr.f32.gmra.mxu0 %v23
  %v611 = vpop.f32.mrf.mxu0
  %v612 = vadd.f32 0.0, %v611
  %v613 = vpop.f32.mrf.mxu0
  %v614 = vadd.f32 0.0, %v613
  %615 = vdwg.mxu0
  %vm616 = vcmp.gt.f32.partialorder %v541, 0.0
  %vm617 = vcmp.gt.f32.partialorder %v543, 0.0
  %vm618 = vcmp.gt.f32.partialorder %v612, 0.0
  %vm619 = vcmp.gt.f32.partialorder %v614, 0.0
  %v620 = vmul.f32 %v541, 0.01
  %v621 = vmul.f32 %v543, 0.01
  %v622 = vmul.f32 %v612, 0.01
  %v623 = vmul.f32 %v614, 0.01
  %v624 = vsel %vm616, %v541, %v620
  %v625 = vsel %vm617, %v543, %v621
  %v626 = vsel %vm618, %v612, %v622
  %v627 = vsel %vm619, %v614, %v623
  %vm628 = vcmask 130048
  %v630 = vsel %vm628, %v627, 0
  %632 = vmatprep.subr.mxu0 %v266
  %633 = vmatpush1.msra.mxu0 %v265
  %634 = vmatprep.subr.mxu0 %v263
  %635 = vmatpush1.msra.mxu0 %v262
  %636 = vmatprep.subr.mxu0 %v260
  %637 = vmatpush1.msra.mxu0 %v259
  %638 = vmatprep.subr.mxu0 %v257
  %639 = vmatpush1.msra.mxu0 %v256
  %640 = vmatprep.subr.mxu0 %v254
  %641 = vmatpush1.msra.mxu0 %v253
  %642 = vmatprep.subr.mxu0 %v251
  %643 = vmatpush1.msra.mxu0 %v250
  %644 = vmatprep.subr.mxu0 %v248
  %645 = vmatpush1.msra.mxu0 %v247
  %646 = vmatprep.subr.mxu0 %v245
  %647 = vmatpush1.msra.mxu0 %v244
  %648 = vmatprep.subr.mxu0 %v242
  %649 = vmatpush1.msra.mxu0 %v241
  %650 = vmatprep.subr.mxu0 %v239
  %651 = vmatpush1.msra.mxu0 %v238
  %652 = vmatprep.subr.mxu0 %v236
  %653 = vmatpush1.msra.mxu0 %v235
  %654 = vmatprep.subr.mxu0 %v233
  %655 = vmatpush1.msra.mxu0 %v232
  %656 = vmatprep.subr.mxu0 %v230
  %657 = vmatpush1.msra.mxu0 %v229
  %658 = vmatprep.subr.mxu0 %v227
  %659 = vmatpush1.msra.mxu0 %v226
  %660 = vmatprep.subr.mxu0 %v224
  %661 = vmatpush1.msra.mxu0 %v223
  %662 = vmatprep.subr.mxu0 %v221
  %663 = vmatpush1.msra.mxu0 %v220
  %664 = vmatprep.subr.mxu0 %v314
  %665 = vmatpush2.msra.mxu0 %v313
  %666 = vmatprep.subr.mxu0 %v311
  %667 = vmatpush2.msra.mxu0 %v310
  %668 = vmatprep.subr.mxu0 %v308
  %669 = vmatpush2.msra.mxu0 %v307
  %670 = vmatprep.subr.mxu0 %v305
  %671 = vmatpush2.msra.mxu0 %v304
  %672 = vmatprep.subr.mxu0 %v302
  %673 = vmatpush2.msra.mxu0 %v301
  %674 = vmatprep.subr.mxu0 %v299
  %675 = vmatpush2.msra.mxu0 %v298
  %676 = vmatprep.subr.mxu0 %v296
  %677 = vmatpush2.msra.mxu0 %v295
  %678 = vmatprep.subr.mxu0 %v293
  %679 = vmatpush2.msra.mxu0 %v292
  %680 = vmatprep.subr.mxu0 %v290
  %681 = vmatpush2.msra.mxu0 %v289
  %682 = vmatprep.subr.mxu0 %v287
  %683 = vmatpush2.msra.mxu0 %v286
  %684 = vmatprep.subr.mxu0 %v284
  %685 = vmatpush2.msra.mxu0 %v283
  %686 = vmatprep.subr.mxu0 %v281
  %687 = vmatpush2.msra.mxu0 %v280
  %688 = vmatprep.subr.mxu0 %v278
  %689 = vmatpush2.msra.mxu0 %v277
  %690 = vmatprep.subr.mxu0 %v275
  %691 = vmatpush2.msra.mxu0 %v274
  %692 = vmatprep.subr.mxu0 %v272
  %693 = vmatpush2.msra.mxu0 %v271
  %694 = vmatprep.subr.mxu0 %v269
  %695 = vmatpush2.msra.mxu0 %v268
  %696 = vmatprep.mubr.f32.mxu0 %v625
  %697 = vmatmul.mubr.f32.gmra.mxu0 %v624
  %v698 = vpop.f32.mrf.mxu0
  %v699 = vadd.f32 0.0, %v698
  %v700 = vpop.f32.mrf.mxu0
  %v701 = vadd.f32 0.0, %v700
  %702 = vdwg.mxu0
  %703 = vmatprep.subr.mxu0 %v362
  %704 = vmatpush1.msra.mxu0 %v361
  %705 = vmatprep.subr.mxu0 %v359
  %706 = vmatpush1.msra.mxu0 %v358
  %707 = vmatprep.subr.mxu0 %v356
  %708 = vmatpush1.msra.mxu0 %v355
  %709 = vmatprep.subr.mxu0 %v353
  %710 = vmatpush1.msra.mxu0 %v352
  %711 = vmatprep.subr.mxu0 %v350
  %712 = vmatpush1.msra.mxu0 %v349
  %713 = vmatprep.subr.mxu0 %v347
  %714 = vmatpush1.msra.mxu0 %v346
  %715 = vmatprep.subr.mxu0 %v344
  %716 = vmatpush1.msra.mxu0 %v343
  %717 = vmatprep.subr.mxu0 %v341
  %718 = vmatpush1.msra.mxu0 %v340
  %719 = vmatprep.subr.mxu0 %v338
  %720 = vmatpush1.msra.mxu0 %v337
  %721 = vmatprep.subr.mxu0 %v335
  %722 = vmatpush1.msra.mxu0 %v334
  %723 = vmatprep.subr.mxu0 %v332
  %724 = vmatpush1.msra.mxu0 %v331
  %725 = vmatprep.subr.mxu0 %v329
  %726 = vmatpush1.msra.mxu0 %v328
  %727 = vmatprep.subr.mxu0 %v326
  %728 = vmatpush1.msra.mxu0 %v325
  %729 = vmatprep.subr.mxu0 %v323
  %730 = vmatpush1.msra.mxu0 %v322
  %731 = vmatprep.subr.mxu0 %v320
  %732 = vmatpush1.msra.mxu0 %v319
  %733 = vmatprep.subr.mxu0 %v317
  %734 = vmatpush1.msra.mxu0 %v316
  %735 = vmatprep.subr.mxu0 0.0
  %736 = vmatpush2.msra.mxu0 0.0
  %737 = vmatprep.subr.mxu0 0.0
  %738 = vmatpush2.msra.mxu0 0.0
  %739 = vmatprep.subr.mxu0 0.0
  %740 = vmatpush2.msra.mxu0 0.0
  %741 = vmatprep.subr.mxu0 0.0
  %742 = vmatpush2.msra.mxu0 0.0
  %743 = vmatprep.subr.mxu0 0.0
  %744 = vmatpush2.msra.mxu0 0.0
  %745 = vmatprep.subr.mxu0 0.0
  %746 = vmatpush2.msra.mxu0 0.0
  %747 = vmatprep.subr.mxu0 0.0
  %748 = vmatpush2.msra.mxu0 0.0
  %749 = vmatprep.subr.mxu0 0.0
  %750 = vmatpush2.msra.mxu0 0.0
  %751 = vmatprep.subr.mxu0 0.0
  %752 = vmatpush2.msra.mxu0 0.0
  %753 = vmatprep.subr.mxu0 0.0
  %754 = vmatpush2.msra.mxu0 0.0
  %755 = vmatprep.subr.mxu0 0.0
  %756 = vmatpush2.msra.mxu0 0.0
  %757 = vmatprep.subr.mxu0 0.0
  %758 = vmatpush2.msra.mxu0 0.0
  %759 = vmatprep.subr.mxu0 0.0
  %760 = vmatpush2.msra.mxu0 0.0
  %761 = vmatprep.subr.mxu0 0.0
  %762 = vmatpush2.msra.mxu0 0.0
  %763 = vmatprep.subr.mxu0 %v368
  %764 = vmatpush2.msra.mxu0 %v367
  %765 = vmatprep.subr.mxu0 %v365
  %766 = vmatpush2.msra.mxu0 %v364
  %767 = vmatprep.mubr.f32.mxu0 %v630
  %768 = vmatmul.mubr.f32.gmra.mxu0 %v626
  %v769 = vpop.f32.mrf.mxu0
  %v770 = vadd.f32 %v699, %v769
  %v771 = vpop.f32.mrf.mxu0
  %v772 = vadd.f32 %v701, %v771
  %773 = vdwg.mxu0
  %774 = vmatprep.subr.mxu0 0.0
  %775 = vmatpush1.msra.mxu0 %v267
  %776 = vmatprep.subr.mxu0 0.0
  %777 = vmatpush1.msra.mxu0 %v264
  %778 = vmatprep.subr.mxu0 0.0
  %779 = vmatpush1.msra.mxu0 %v261
  %780 = vmatprep.subr.mxu0 0.0
  %781 = vmatpush1.msra.mxu0 %v258
  %782 = vmatprep.subr.mxu0 0.0
  %783 = vmatpush1.msra.mxu0 %v255
  %784 = vmatprep.subr.mxu0 0.0
  %785 = vmatpush1.msra.mxu0 %v252
  %786 = vmatprep.subr.mxu0 0.0
  %787 = vmatpush1.msra.mxu0 %v249
  %788 = vmatprep.subr.mxu0 0.0
  %789 = vmatpush1.msra.mxu0 %v246
  %790 = vmatprep.subr.mxu0 0.0
  %791 = vmatpush1.msra.mxu0 %v243
  %792 = vmatprep.subr.mxu0 0.0
  %793 = vmatpush1.msra.mxu0 %v240
  %794 = vmatprep.subr.mxu0 0.0
  %795 = vmatpush1.msra.mxu0 %v237
  %796 = vmatprep.subr.mxu0 0.0
  %797 = vmatpush1.msra.mxu0 %v234
  %798 = vmatprep.subr.mxu0 0.0
  %799 = vmatpush1.msra.mxu0 %v231
  %800 = vmatprep.subr.mxu0 0.0
  %801 = vmatpush1.msra.mxu0 %v228
  %802 = vmatprep.subr.mxu0 0.0
  %803 = vmatpush1.msra.mxu0 %v225
  %804 = vmatprep.subr.mxu0 0.0
  %805 = vmatpush1.msra.mxu0 %v222
  %806 = vmatprep.subr.mxu0 0.0
  %807 = vmatpush2.msra.mxu0 %v315
  %808 = vmatprep.subr.mxu0 0.0
  %809 = vmatpush2.msra.mxu0 %v312
  %810 = vmatprep.subr.mxu0 0.0
  %811 = vmatpush2.msra.mxu0 %v309
  %812 = vmatprep.subr.mxu0 0.0
  %813 = vmatpush2.msra.mxu0 %v306
  %814 = vmatprep.subr.mxu0 0.0
  %815 = vmatpush2.msra.mxu0 %v303
  %816 = vmatprep.subr.mxu0 0.0
  %817 = vmatpush2.msra.mxu0 %v300
  %818 = vmatprep.subr.mxu0 0.0
  %819 = vmatpush2.msra.mxu0 %v297
  %820 = vmatprep.subr.mxu0 0.0
  %821 = vmatpush2.msra.mxu0 %v294
  %822 = vmatprep.subr.mxu0 0.0
  %823 = vmatpush2.msra.mxu0 %v291
  %824 = vmatprep.subr.mxu0 0.0
  %825 = vmatpush2.msra.mxu0 %v288
  %826 = vmatprep.subr.mxu0 0.0
  %827 = vmatpush2.msra.mxu0 %v285
  %828 = vmatprep.subr.mxu0 0.0
  %829 = vmatpush2.msra.mxu0 %v282
  %830 = vmatprep.subr.mxu0 0.0
  %831 = vmatpush2.msra.mxu0 %v279
  %832 = vmatprep.subr.mxu0 0.0
  %833 = vmatpush2.msra.mxu0 %v276
  %834 = vmatprep.subr.mxu0 0.0
  %835 = vmatpush2.msra.mxu0 %v273
  %836 = vmatprep.subr.mxu0 0.0
  %837 = vmatpush2.msra.mxu0 %v270
  %838 = vmatprep.mubr.f32.mxu0 %v625
  %839 = vmatmul.mubr.f32.gmra.mxu0 %v624
  %v840 = vpop.f32.mrf.mxu0
  %v841 = vadd.f32 0.0, %v840
  %v842 = vpop.f32.mrf.mxu0
  %843 = vdwg.mxu0
  %844 = vmatprep.subr.mxu0 0.0
  %845 = vmatpush1.msra.mxu0 %v363
  %846 = vmatprep.subr.mxu0 0.0
  %847 = vmatpush1.msra.mxu0 %v360
  %848 = vmatprep.subr.mxu0 0.0
  %849 = vmatpush1.msra.mxu0 %v357
  %850 = vmatprep.subr.mxu0 0.0
  %851 = vmatpush1.msra.mxu0 %v354
  %852 = vmatprep.subr.mxu0 0.0
  %853 = vmatpush1.msra.mxu0 %v351
  %854 = vmatprep.subr.mxu0 0.0
  %855 = vmatpush1.msra.mxu0 %v348
  %856 = vmatprep.subr.mxu0 0.0
  %857 = vmatpush1.msra.mxu0 %v345
  %858 = vmatprep.subr.mxu0 0.0
  %859 = vmatpush1.msra.mxu0 %v342
  %860 = vmatprep.subr.mxu0 0.0
  %861 = vmatpush1.msra.mxu0 %v339
  %862 = vmatprep.subr.mxu0 0.0
  %863 = vmatpush1.msra.mxu0 %v336
  %864 = vmatprep.subr.mxu0 0.0
  %865 = vmatpush1.msra.mxu0 %v333
  %866 = vmatprep.subr.mxu0 0.0
  %867 = vmatpush1.msra.mxu0 %v330
  %868 = vmatprep.subr.mxu0 0.0
  %869 = vmatpush1.msra.mxu0 %v327
  %870 = vmatprep.subr.mxu0 0.0
  %871 = vmatpush1.msra.mxu0 %v324
  %872 = vmatprep.subr.mxu0 0.0
  %873 = vmatpush1.msra.mxu0 %v321
  %874 = vmatprep.subr.mxu0 0.0
  %875 = vmatpush1.msra.mxu0 %v318
  %876 = vmatprep.subr.mxu0 0.0
  %877 = vmatpush2.msra.mxu0 0.0
  %878 = vmatprep.subr.mxu0 0.0
  %879 = vmatpush2.msra.mxu0 0.0
  %880 = vmatprep.subr.mxu0 0.0
  %881 = vmatpush2.msra.mxu0 0.0
  %882 = vmatprep.subr.mxu0 0.0
  %883 = vmatpush2.msra.mxu0 0.0
  %884 = vmatprep.subr.mxu0 0.0
  %885 = vmatpush2.msra.mxu0 0.0
  %886 = vmatprep.subr.mxu0 0.0
  %887 = vmatpush2.msra.mxu0 0.0
  %888 = vmatprep.subr.mxu0 0.0
  %889 = vmatpush2.msra.mxu0 0.0
  %890 = vmatprep.subr.mxu0 0.0
  %891 = vmatpush2.msra.mxu0 0.0
  %892 = vmatprep.subr.mxu0 0.0
  %893 = vmatpush2.msra.mxu0 0.0
  %894 = vmatprep.subr.mxu0 0.0
  %895 = vmatpush2.msra.mxu0 0.0
  %896 = vmatprep.subr.mxu0 0.0
  %897 = vmatpush2.msra.mxu0 0.0
  %898 = vmatprep.subr.mxu0 0.0
  %899 = vmatpush2.msra.mxu0 0.0
  %900 = vmatprep.subr.mxu0 0.0
  %901 = vmatpush2.msra.mxu0 0.0
  %902 = vmatprep.subr.mxu0 0.0
  %903 = vmatpush2.msra.mxu0 0.0
  %904 = vmatprep.subr.mxu0 0.0
  %905 = vmatpush2.msra.mxu0 %v369
  %906 = vmatprep.subr.mxu0 0.0
  %907 = vmatpush2.msra.mxu0 %v366
  %908 = vmatprep.mubr.f32.mxu0 %v630
  %909 = vmatmul.mubr.f32.gmra.mxu0 %v626
  %v910 = vpop.f32.mrf.mxu0
  %v911 = vadd.f32 %v841, %v910
  %v912 = vpop.f32.mrf.mxu0
  %913 = vdwg.mxu0
  %vm914 = vcmp.gt.f32.partialorder %v770, 0.0
  %vm915 = vcmp.gt.f32.partialorder %v772, 0.0
  %vm916 = vcmp.gt.f32.partialorder %v911, 0.0
  %v917 = vmul.f32 %v770, 0.01
  %v918 = vmul.f32 %v772, 0.01
  %v919 = vmul.f32 %v911, 0.01
  %v920 = vsel %vm914, %v770, %v917
  %v921 = vsel %vm915, %v772, %v918
  %v922 = vsel %vm916, %v911, %v919
  %v924 = vlaneseq
  %v925 = vshrl.u32 %v924, 7
  %v926 = vsub.s32 0, %v925
  %v927 = vrot.slane %v472, %v926
  %vm929 = vcmask 261120
  %v931 = vsel %vm929, %v922, 0
  %933 = vmatprep.subr.mxu0 0.0
  %934 = vmatpush1.msra.mxu0 %v421
  %935 = vmatprep.subr.mxu0 0.0
  %936 = vmatpush1.msra.mxu0 %v420
  %937 = vmatprep.subr.mxu0 0.0
  %938 = vmatpush1.msra.mxu0 %v419
  %939 = vmatprep.subr.mxu0 0.0
  %940 = vmatpush1.msra.mxu0 %v418
  %941 = vmatprep.subr.mxu0 0.0
  %942 = vmatpush1.msra.mxu0 %v417
  %943 = vmatprep.subr.mxu0 0.0
  %944 = vmatpush1.msra.mxu0 %v416
  %945 = vmatprep.subr.mxu0 0.0
  %946 = vmatpush1.msra.mxu0 %v415
  %947 = vmatprep.subr.mxu0 0.0
  %948 = vmatpush1.msra.mxu0 %v414
  %949 = vmatprep.subr.mxu0 0.0
  %950 = vmatpush1.msra.mxu0 %v413
  %951 = vmatprep.subr.mxu0 0.0
  %952 = vmatpush1.msra.mxu0 %v412
  %953 = vmatprep.subr.mxu0 0.0
  %954 = vmatpush1.msra.mxu0 %v411
  %955 = vmatprep.subr.mxu0 0.0
  %956 = vmatpush1.msra.mxu0 %v410
  %957 = vmatprep.subr.mxu0 0.0
  %958 = vmatpush1.msra.mxu0 %v409
  %959 = vmatprep.subr.mxu0 0.0
  %960 = vmatpush1.msra.mxu0 %v408
  %961 = vmatprep.subr.mxu0 0.0
  %962 = vmatpush1.msra.mxu0 %v407
  %963 = vmatprep.subr.mxu0 0.0
  %964 = vmatpush1.msra.mxu0 %v406
  %965 = vmatprep.subr.mxu0 0.0
  %966 = vmatpush2.msra.mxu0 %v437
  %967 = vmatprep.subr.mxu0 0.0
  %968 = vmatpush2.msra.mxu0 %v436
  %969 = vmatprep.subr.mxu0 0.0
  %970 = vmatpush2.msra.mxu0 %v435
  %971 = vmatprep.subr.mxu0 0.0
  %972 = vmatpush2.msra.mxu0 %v434
  %973 = vmatprep.subr.mxu0 0.0
  %974 = vmatpush2.msra.mxu0 %v433
  %975 = vmatprep.subr.mxu0 0.0
  %976 = vmatpush2.msra.mxu0 %v432
  %977 = vmatprep.subr.mxu0 0.0
  %978 = vmatpush2.msra.mxu0 %v431
  %979 = vmatprep.subr.mxu0 0.0
  %980 = vmatpush2.msra.mxu0 %v430
  %981 = vmatprep.subr.mxu0 0.0
  %982 = vmatpush2.msra.mxu0 %v429
  %983 = vmatprep.subr.mxu0 0.0
  %984 = vmatpush2.msra.mxu0 %v428
  %985 = vmatprep.subr.mxu0 0.0
  %986 = vmatpush2.msra.mxu0 %v427
  %987 = vmatprep.subr.mxu0 0.0
  %988 = vmatpush2.msra.mxu0 %v426
  %989 = vmatprep.subr.mxu0 0.0
  %990 = vmatpush2.msra.mxu0 %v425
  %991 = vmatprep.subr.mxu0 0.0
  %992 = vmatpush2.msra.mxu0 %v424
  %993 = vmatprep.subr.mxu0 0.0
  %994 = vmatpush2.msra.mxu0 %v423
  %995 = vmatprep.subr.mxu0 0.0
  %996 = vmatpush2.msra.mxu0 %v422
  %997 = vmatprep.mubr.f32.mxu0 %v921
  %998 = vmatmul.mubr.f32.gmra.mxu0 %v920
  %v999 = vpop.f32.mrf.mxu0
  %v1000 = vadd.f32 %v927, %v999
  %v1001 = vpop.f32.mrf.mxu0
  %1002 = vdwg.mxu0
  %1003 = vmatprep.subr.mxu0 0.0
  %1004 = vmatpush1.msra.mxu0 0.0
  %1005 = vmatprep.subr.mxu0 0.0
  %1006 = vmatpush1.msra.mxu0 0.0
  %1007 = vmatprep.subr.mxu0 0.0
  %1008 = vmatpush1.msra.mxu0 0.0
  %1009 = vmatprep.subr.mxu0 0.0
  %1010 = vmatpush1.msra.mxu0 0.0
  %1011 = vmatprep.subr.mxu0 0.0
  %1012 = vmatpush1.msra.mxu0 0.0
  %1013 = vmatprep.subr.mxu0 0.0
  %1014 = vmatpush1.msra.mxu0 0.0
  %1015 = vmatprep.subr.mxu0 0.0
  %1016 = vmatpush1.msra.mxu0 0.0
  %1017 = vmatprep.subr.mxu0 0.0
  %1018 = vmatpush1.msra.mxu0 0.0
  %1019 = vmatprep.subr.mxu0 0.0
  %1020 = vmatpush1.msra.mxu0 0.0
  %1021 = vmatprep.subr.mxu0 0.0
  %1022 = vmatpush1.msra.mxu0 0.0
  %1023 = vmatprep.subr.mxu0 0.0
  %1024 = vmatpush1.msra.mxu0 0.0
  %1025 = vmatprep.subr.mxu0 0.0
  %1026 = vmatpush1.msra.mxu0 0.0
  %1027 = vmatprep.subr.mxu0 0.0
  %1028 = vmatpush1.msra.mxu0 %v441
  %1029 = vmatprep.subr.mxu0 0.0
  %1030 = vmatpush1.msra.mxu0 %v440
  %1031 = vmatprep.subr.mxu0 0.0
  %1032 = vmatpush1.msra.mxu0 %v439
  %1033 = vmatprep.subr.mxu0 0.0
  %1034 = vmatpush1.msra.mxu0 %v438
  %1035 = vmatprep.subr.mxu0 0.0
  %1036 = vmatpush2.msra.mxu0 0.0
  %1037 = vmatprep.subr.mxu0 0.0
  %1038 = vmatpush2.msra.mxu0 0.0
  %1039 = vmatprep.subr.mxu0 0.0
  %1040 = vmatpush2.msra.mxu0 0.0
  %1041 = vmatprep.subr.mxu0 0.0
  %1042 = vmatpush2.msra.mxu0 0.0
  %1043 = vmatprep.subr.mxu0 0.0
  %1044 = vmatpush2.msra.mxu0 0.0
  %1045 = vmatprep.subr.mxu0 0.0
  %1046 = vmatpush2.msra.mxu0 0.0
  %1047 = vmatprep.subr.mxu0 0.0
  %1048 = vmatpush2.msra.mxu0 0.0
  %1049 = vmatprep.subr.mxu0 0.0
  %1050 = vmatpush2.msra.mxu0 0.0
  %1051 = vmatprep.subr.mxu0 0.0
  %1052 = vmatpush2.msra.mxu0 0.0
  %1053 = vmatprep.subr.mxu0 0.0
  %1054 = vmatpush2.msra.mxu0 0.0
  %1055 = vmatprep.subr.mxu0 0.0
  %1056 = vmatpush2.msra.mxu0 0.0
  %1057 = vmatprep.subr.mxu0 0.0
  %1058 = vmatpush2.msra.mxu0 0.0
  %1059 = vmatprep.subr.mxu0 0.0
  %1060 = vmatpush2.msra.mxu0 0.0
  %1061 = vmatprep.subr.mxu0 0.0
  %1062 = vmatpush2.msra.mxu0 0.0
  %1063 = vmatprep.subr.mxu0 0.0
  %1064 = vmatpush2.msra.mxu0 0.0
  %1065 = vmatprep.subr.mxu0 0.0
  %1066 = vmatpush2.msra.mxu0 0.0
  %1067 = vmatprep.mubr.f32.mxu0 0.0
  %1068 = vmatmul.mubr.f32.gmra.mxu0 %v931
  %v1069 = vpop.f32.mrf.mxu0
  %v1070 = vadd.f32 %v1000, %v1069
  %v1071 = vpop.f32.mrf.mxu0
  %1072 = vdwg.mxu0
  %vm1073 = vcmp.gt.f32.partialorder %v1070, 0.0
  %v1074 = vmul.f32 %v1070, 0.01
  %v1075 = vsel %vm1073, %v1070, %v1074
  %v1077 = vlaneseq
  %v1078 = vshrl.u32 %v1077, 7
  %v1079 = vsub.s32 0, %v1078
  %v1080 = vrot.slane %v473, %v1079
  %vm1082 = vcmask 982016
  %v1084 = vsel %vm1082, %v1075, 0
  %1086 = vmatprep.subr.mxu0 0.0
  %1087 = vmatpush1.msra.mxu0 0.0
  %1088 = vmatprep.subr.mxu0 0.0
  %1089 = vmatpush1.msra.mxu0 %v471
  %1090 = vmatprep.subr.mxu0 0.0
  %1091 = vmatpush1.msra.mxu0 %v470
  %1092 = vmatprep.subr.mxu0 0.0
  %1093 = vmatpush1.msra.mxu0 %v469
  %1094 = vmatprep.subr.mxu0 0.0
  %1095 = vmatpush1.msra.mxu0 %v468
  %1096 = vmatprep.subr.mxu0 0.0
  %1097 = vmatpush1.msra.mxu0 %v467
  %1098 = vmatprep.subr.mxu0 0.0
  %1099 = vmatpush1.msra.mxu0 %v466
  %1100 = vmatprep.subr.mxu0 0.0
  %1101 = vmatpush1.msra.mxu0 %v465
  %1102 = vmatprep.subr.mxu0 0.0
  %1103 = vmatpush1.msra.mxu0 %v464
  %1104 = vmatprep.subr.mxu0 0.0
  %1105 = vmatpush1.msra.mxu0 %v463
  %1106 = vmatprep.subr.mxu0 0.0
  %1107 = vmatpush1.msra.mxu0 %v462
  %1108 = vmatprep.subr.mxu0 0.0
  %1109 = vmatpush1.msra.mxu0 %v461
  %1110 = vmatprep.subr.mxu0 0.0
  %1111 = vmatpush1.msra.mxu0 %v460
  %1112 = vmatprep.subr.mxu0 0.0
  %1113 = vmatpush1.msra.mxu0 %v459
  %1114 = vmatprep.subr.mxu0 0.0
  %1115 = vmatpush1.msra.mxu0 %v458
  %1116 = vmatprep.subr.mxu0 0.0
  %1117 = vmatpush1.msra.mxu0 %v457
  %1118 = vmatprep.subr.mxu0 0.0
  %1119 = vmatpush2.msra.mxu0 0.0
  %1120 = vmatprep.subr.mxu0 0.0
  %1121 = vmatpush2.msra.mxu0 0.0
  %1122 = vmatprep.subr.mxu0 0.0
  %1123 = vmatpush2.msra.mxu0 0.0
  %1124 = vmatprep.subr.mxu0 0.0
  %1125 = vmatpush2.msra.mxu0 0.0
  %1126 = vmatprep.subr.mxu0 0.0
  %1127 = vmatpush2.msra.mxu0 0.0
  %1128 = vmatprep.subr.mxu0 0.0
  %1129 = vmatpush2.msra.mxu0 0.0
  %1130 = vmatprep.subr.mxu0 0.0
  %1131 = vmatpush2.msra.mxu0 0.0
  %1132 = vmatprep.subr.mxu0 0.0
  %1133 = vmatpush2.msra.mxu0 0.0
  %1134 = vmatprep.subr.mxu0 0.0
  %1135 = vmatpush2.msra.mxu0 0.0
  %1136 = vmatprep.subr.mxu0 0.0
  %1137 = vmatpush2.msra.mxu0 0.0
  %1138 = vmatprep.subr.mxu0 0.0
  %1139 = vmatpush2.msra.mxu0 0.0
  %1140 = vmatprep.subr.mxu0 0.0
  %1141 = vmatpush2.msra.mxu0 0.0
  %1142 = vmatprep.subr.mxu0 0.0
  %1143 = vmatpush2.msra.mxu0 0.0
  %1144 = vmatprep.subr.mxu0 0.0
  %1145 = vmatpush2.msra.mxu0 0.0
  %1146 = vmatprep.subr.mxu0 0.0
  %1147 = vmatpush2.msra.mxu0 0.0
  %1148 = vmatprep.subr.mxu0 0.0
  %1149 = vmatpush2.msra.mxu0 0.0
  %1150 = vmatprep.mubr.f32.mxu0 0.0
  %1151 = vmatmul.mubr.f32.gmra.mxu0 %v1084
  %v1152 = vpop.f32.mrf.mxu0
  %v1153 = vadd.f32 %v1080, %v1152
  %v1154 = vpop.f32.mrf.mxu0
  %1155 = vdwg.mxu0
  %v1156 = vlaneseq
  %v1157 = vand.u32 %v1156, 127
  %vm1158 = vcmp.lt.s32.totalorder %v1157, 36
  %vm1159 = vcmp.eq.s32.totalorder %v1157, 36
  %v1160 = vand.u32 2147483647, %v23
  %vm1161 = vcmp.ne.f32.partialorder %v1160, 1.0
  %v1162 = vsel %vm1161, 1, 0
  %v1163 = vcvt.s32.f32 %v1162
  %v1164 = vsel %vm1158, %v1163, 0.0
  %v1165 = vsel %vm1158, %v1153, -1e+30
  %1166 = vmax.xlane.f32.xlu0 %v1165
  %v1167 = vpop.xlane.xlu0 %1166
  %v1168 = vsub.f32 %v1165, %v1167
  %v1169 = vmul.f32 %v1168, 1.442695
  %v1170 = vpow.pop %v1169
  %v1171 = vmul.f32 %v1164, %v1170
  %1172 = vadd.xlane.f32.xlu0 %v1171
  %v1173 = vpop.xlane.xlu0 %1172
  %v1174 = vrcp.pop %v1173
  %v1175 = vmul.f32 %v1171, %v1174
  %v1176 = vtanh.pop %v1153
  %v1177 = vsel %vm1159, %v1176, 0.0
  %v1178 = vadd.f32 %v1175, %v1177
  %1179 = vst [vmem:[%s6] sm:$0xff] %v1178
  // Predicated region
  $region26: #{policy_forward.1} parent=0 // pred_check
    _
  $region27: #{policy_forward.1} parent=0 // pred_check_branch
    %1181 = sbr.rel (0) target = $region29
  $region28: #{policy_forward.1} parent=0 // pred_region
    _
  $region29: #{policy_forward.1} parent=0 // pred_fallthru
    _
  // Predicated region
  $region30: #{policy_forward.1} parent=0 // pred_check
    _
  $region31: #{policy_forward.1} parent=0 // pred_check_branch
    %1183 = sbr.rel (0) target = $region33
  $region32: #{policy_forward.1} parent=0 // pred_region
    _
  $region33: #{policy_forward.1} parent=0 // pred_fallthru
    _

</llo_original>
